<compile_context>
chip_gen: v7x
topology: tpu7x:2x2x1
jax: 0.10.0
libtpu: 0.0.40
codegen_flags: <defaults>
</compile_context>

<pallas_src>
import functools

import jax
import jax.numpy as jnp
import numpy as np
from jax.experimental import pallas as pl
from jax.experimental.pallas import tpu as pltpu

BN_EPS = 1e-5
GINE_EPS = 0.0            # eps=0.0, train_eps=False in the reference module
LANE = 128                # TPU lane width — feature dims padded to this
SUBLANE = 8
EDGE_TILE = 256           # edge (reduction) tile; fills a 256x256 MXU pass
MASK_CACHE_LIMIT = 8 * 1024 * 1024   # VMEM budget for the cross-layer mask cache


# ---------------------------------------------------------------------------
# Fused Pallas kernel (built as a closure so static config picks the code path)
# grid = (num_layers, num_edge_tiles); both axes carry VMEM scratch state.
# ---------------------------------------------------------------------------
def _make_gine_kernel(use_take_gather, use_bf16, cache_masks):
    cdt = jnp.bfloat16 if use_bf16 else jnp.float32   # MXU operand dtype

    def kernel(x_ref, ea_ref, src_ref, dst_ref,
               pre_scale_ref, pre_shift_ref,
               we_ref, be_ref, wnn_ref, bnn_ref,
               post_scale_ref, post_shift_ref,
               wfc_ref, o_ref,
               h_ref, aggr_ref, *opt_scratch):
        smask_ref = opt_scratch[0] if cache_masks else None

        layer = pl.program_id(0)
        etile = pl.program_id(1)
        n_layers = pl.num_programs(0)
        n_etiles = pl.num_programs(1)
        n_nodes = h_ref.shape[0]
        te = ea_ref.shape[0]

        # ---- one-time init: folded input BatchNorm on the raw node features ----
        @pl.when(jnp.logical_and(layer == 0, etile == 0))
        def _():
            h_ref[...] = x_ref[...] * pre_scale_ref[...] + pre_shift_ref[...]

        # ---- per-layer init: zero the aggregation accumulator -------------------
        @pl.when(etile == 0)
        def _():
            aggr_ref[...] = jnp.zeros_like(aggr_ref)

        h = h_ref[...]                                       # (N, F) node features (f32)

        # ---- gather x_j = h[src] for this edge tile ------------------------------
        if use_take_gather:
            # True O(te*F) row gather; src is lane-major (1, te), padded edges use
            # index 0 (their messages are dropped by the dst == -1 scatter mask).
            idx = src_ref[0, :]                              # (te,) int32
            x_j = jnp.take(h, idx, axis=0, mode="promise_in_bounds")   # (te, F) f32, exact
        else:
            # Fallback: one-hot MXU gather (O(te*N*F)), bf16 0/1 mask is exact.
            gather_oh = jnp.where(
                src_ref[...] == jax.lax.broadcasted_iota(jnp.int32, (te, n_nodes), 1),
                1.0, 0.0).astype(cdt)                        # (te, N)
            x_j = jnp.dot(gather_oh, h.astype(cdt), preferred_element_type=jnp.float32)

        # ---- edge projection + message -------------------------------------------
        e_proj = (jnp.dot(ea_ref[...], we_ref[0], preferred_element_type=jnp.float32)
                  + be_ref[0])                               # (te, F) f32
        msgs = jnp.maximum(x_j + e_proj, 0.0)                # (te, F) f32

        # ---- scatter-add into aggr via one-hot matmul -----------------------------
        # S[n, e] = (dst[e] == n); padded edges have dst = -1 -> all-zero column.
        def _scatter_mask():
            return jnp.where(
                jax.lax.broadcasted_iota(jnp.int32, (n_nodes, te), 0) == dst_ref[...],
                1.0, 0.0).astype(cdt)                        # (N, te)

        if cache_masks:
            # Mask depends only on the edge tile, not the layer: build on layer 0,
            # reuse for every later layer.
            @pl.when(layer == 0)
            def _():
                smask_ref[etile] = _scatter_mask()
            scatter_oh = smask_ref[etile]
        else:
            scatter_oh = _scatter_mask()

        aggr_ref[...] += jnp.dot(scatter_oh, msgs.astype(cdt),
                                 preferred_element_type=jnp.float32)

        # ---- last edge tile: GINE node update (nn = Linear + Tanh, folded BN) ---
        @pl.when(etile == n_etiles - 1)
        def _():
            upd = (1.0 + GINE_EPS) * h_ref[...] + aggr_ref[...]
            upd = (jnp.dot(upd.astype(cdt), wnn_ref[0],
                           preferred_element_type=jnp.float32) + bnn_ref[0])
            h_ref[...] = jnp.tanh(upd) * post_scale_ref[0] + post_shift_ref[0]

        # ---- very last grid step: fc head + tanh -> kernel output ---------------
        @pl.when(jnp.logical_and(layer == n_layers - 1, etile == n_etiles - 1))
        def _():
            o_ref[...] = jnp.tanh(
                jnp.dot(h_ref[...].astype(cdt), wfc_ref[...],
                        preferred_element_type=jnp.float32))

    return kernel


# ---------------------------------------------------------------------------
# Wrapper: pad / fold / stack parameters, then one pallas_call.
# ---------------------------------------------------------------------------
def _round_up(n, m):
    return ((n + m - 1) // m) * m


def _pad2d(a, rows, cols, value=0.0):
    r, c = a.shape
    return jnp.pad(a, ((0, rows - r), (0, cols - c)), constant_values=value)


def _fold_bn(bn, feat_pad):
    gamma, beta, mean, var = bn
    scale = gamma * jax.lax.rsqrt(var + BN_EPS)
    shift = beta - mean * scale
    # zero padding keeps all padded lanes exactly 0 throughout the network
    return _pad2d(scale, 1, feat_pad), _pad2d(shift, 1, feat_pad)


@functools.partial(jax.jit, static_argnames=("use_take_gather", "use_bf16", "cache_masks"))
def gine_forward(params, x, src, dst, edge_attr,
                 use_take_gather=True, use_bf16=True, cache_masks=True):
    """Full GINE.forward (x_importance=None path) as one fused Pallas call."""
    n_nodes, in_ch = x.shape
    n_edges = edge_attr.shape[0]
    dim = params["layers"][0]["W_nn"].shape[1]
    out_ch = params["W_fc"].shape[1]
    n_layers = len(params["layers"])

    cdt = jnp.bfloat16 if use_bf16 else jnp.float32
    isz = jnp.dtype(cdt).itemsize

    feat = _round_up(max(in_ch, dim, out_ch), LANE)      # lane-dense feature width
    n_pad = _round_up(n_nodes, SUBLANE)
    e_pad = _round_up(n_edges, EDGE_TILE)                # ceil -> no fully-dummy tiles
    n_etiles = e_pad // EDGE_TILE

    # Cross-layer scatter-mask cache only when it pays off and fits the budget.
    cache_bytes = n_etiles * n_pad * EDGE_TILE * isz
    cache_masks = bool(cache_masks and n_layers > 1 and cache_bytes <= MASK_CACHE_LIMIT)

    # ---- pad / fold / stack (static-shape work, fused by XLA around the call)
    x_p = _pad2d(x, n_pad, feat)
    ea_p = _pad2d(edge_attr, e_pad, feat).astype(cdt)
    src_i = src.astype(jnp.int32)
    dst_i = dst.astype(jnp.int32)
    # Padded (dummy) edges: gather from node 0 (always valid), scatter to -1
    # (all-zero one-hot column) -> they contribute nothing.
    if use_take_gather:
        src_p = jnp.zeros((1, e_pad), jnp.int32).at[0, :n_edges].set(src_i)   # lane-major
    else:
        src_p = jnp.zeros((e_pad, 1), jnp.int32).at[:n_edges, 0].set(src_i)   # sublane-major
    dst_p = jnp.full((1, e_pad), -1, jnp.int32).at[0, :n_edges].set(dst_i)

    pre_scale, pre_shift = _fold_bn(params["bn_in"], feat)

    we = jnp.stack([_pad2d(l["W_e"], feat, feat) for l in params["layers"]]).astype(cdt)
    be = jnp.stack([_pad2d(l["b_e"], 1, feat) for l in params["layers"]])
    wnn = jnp.stack([_pad2d(l["W_nn"], feat, feat) for l in params["layers"]]).astype(cdt)
    bnn = jnp.stack([_pad2d(l["b_nn"], 1, feat) for l in params["layers"]])
    post = [_fold_bn(l["bn"], feat) for l in params["layers"]]
    post_scale = jnp.stack([p[0] for p in post])
    post_shift = jnp.stack([p[1] for p in post])
    wfc = _pad2d(params["W_fc"], feat, feat).astype(cdt)

    # ---- advisory cost estimate for the XLA scheduler -----------------------
    gather_flops = (2 * e_pad * feat) if use_take_gather else (2 * e_pad * n_pad * feat)
    flops = n_layers * (gather_flops
                        + 2 * e_pad * feat * feat          # edge projection
                        + 2 * e_pad * n_pad * feat         # scatter-add (one-hot matmul)
                        + 2 * n_pad * feat * feat)         # node MLP
    flops += 2 * n_pad * feat * feat                       # fc head
    transcendentals = (n_layers + 1) * n_pad * feat        # tanh
    ins = (x_p, ea_p, src_p, dst_p, pre_scale, pre_shift, we, be,
           wnn, bnn, post_scale, post_shift, wfc)
    bytes_accessed = int(sum(a.size * a.dtype.itemsize for a in ins) + n_pad * feat * 4)

    # ---- VMEM budget (sized for the actual working set; capped for v7x 64 MiB)
    vmem_est = (2 * n_pad * feat * 4                                  # h + aggr scratch
                + (cache_bytes if cache_masks else 0)                 # mask cache
                + 2 * (EDGE_TILE * feat * isz + 2 * EDGE_TILE * 4)    # ea/src/dst (dbl-buffered)
                + 2 * (2 * feat * feat * isz + 4 * feat * 4)          # per-layer weights/bn
                + 2 * 2 * n_pad * feat * 4                            # x input + output blocks
                + feat * feat * isz)                                  # W_fc
    vmem_limit = int(min(max(4 * vmem_est, 16 * 1024 * 1024), 64 * 1024 * 1024))

    const_map = lambda l, k: (0, 0)
    layer_map3 = lambda l, k: (l, 0, 0)
    etile_row = lambda l, k: (k, 0)
    etile_col = lambda l, k: (0, k)

    src_spec = (pl.BlockSpec((1, EDGE_TILE), etile_col) if use_take_gather
                else pl.BlockSpec((EDGE_TILE, 1), etile_row))

    scratch = [pltpu.VMEM((n_pad, feat), jnp.float32),     # h: carried across layers
               pltpu.VMEM((n_pad, feat), jnp.float32)]     # aggr: edge-tile accumulator
    if cache_masks:
        scratch.append(pltpu.VMEM((n_etiles, n_pad, EDGE_TILE), cdt))

    out_p = pl.pallas_call(
        _make_gine_kernel(use_take_gather, use_bf16, cache_masks),
        out_shape=jax.ShapeDtypeStruct((n_pad, feat), jnp.float32),
        grid=(n_layers, n_etiles),
        in_specs=[
            pl.BlockSpec((n_pad, feat), const_map),                 # x (resident)
            pl.BlockSpec((EDGE_TILE, feat), etile_row),             # edge_attr tile
            src_spec,                                               # src indices
            pl.BlockSpec((1, EDGE_TILE), etile_col),                # dst indices (1,E)
            pl.BlockSpec((1, feat), const_map),                     # folded bn_in scale
            pl.BlockSpec((1, feat), const_map),                     # folded bn_in shift
            pl.BlockSpec((1, feat, feat), layer_map3),              # W_e stack
            pl.BlockSpec((1, 1, feat), layer_map3),                 # b_e stack
            pl.BlockSpec((1, feat, feat), layer_map3),              # W_nn stack
            pl.BlockSpec((1, 1, feat), layer_map3),                 # b_nn stack
            pl.BlockSpec((1, 1, feat), layer_map3),                 # folded post-BN scale
            pl.BlockSpec((1, 1, feat), layer_map3),                 # folded post-BN shift
            pl.BlockSpec((feat, feat), const_map),                  # W_fc (resident)
        ],
        out_specs=pl.BlockSpec((n_pad, feat), const_map),
        scratch_shapes=scratch,
        compiler_params=pltpu.CompilerParams(
            # Both grid axes carry VMEM-resident state (h across layers, aggr
            # across edge tiles) -> sequential on every generation.
            dimension_semantics=("arbitrary", "arbitrary"),
            vmem_limit_bytes=vmem_limit,
        ),
        cost_estimate=pl.CostEstimate(
            flops=int(flops),
            transcendentals=int(transcendentals),
            bytes_accessed=bytes_accessed,
        ),
    )(x_p, ea_p, src_p, dst_p, pre_scale, pre_shift,
      we, be, wnn, bnn, post_scale, post_shift, wfc)

    return out_p[:n_nodes, :out_ch]


# ---------------------------------------------------------------------------
# Deterministic parameter init (shapes follow the PyTorch __init__)
# ---------------------------------------------------------------------------
def _linear(key, fan_in, fan_out, bias=True):
    k1, k2 = jax.random.split(key)
    bound = 1.0 / np.sqrt(fan_in)
    W = jax.random.uniform(k1, (fan_in, fan_out), jnp.float32, -bound, bound)  # W^T: (in, out)
    b = (jax.random.uniform(k2, (1, fan_out), jnp.float32, -bound, bound)
         if bias else jnp.zeros((1, fan_out), jnp.float32))
    return W, b


def _batchnorm(key, num_features):
    k1, k2, k3, k4 = jax.random.split(key, 4)
    gamma = 1.0 + 0.1 * jax.random.normal(k1, (1, num_features), jnp.float32)
    beta = 0.1 * jax.random.normal(k2, (1, num_features), jnp.float32)
    running_mean = 0.1 * jax.random.normal(k3, (1, num_features), jnp.float32)
    running_var = 0.5 + jax.random.uniform(k4, (1, num_features), jnp.float32)
    return gamma, beta, running_mean, running_var


def init_gine_params(key, in_channels, out_channels, dim, num_conv_layers):
    keys = jax.random.split(key, 2 + 3 * num_conv_layers)
    params = {"bn_in": _batchnorm(keys[0], in_channels), "layers": []}
    for i in range(num_conv_layers):
        nn_in = in_channels if i == 0 else dim
        k_e, k_nn, k_bn = keys[1 + 3 * i: 4 + 3 * i]
        W_e, b_e = _linear(k_e, in_channels, nn_in, bias=True)   # GINEConv.lin: edge_dim -> nn_in
        W_nn, b_nn = _linear(k_nn, nn_in, dim, bias=True)        # nn = Linear(nn_in, dim) + Tanh
        bn = _batchnorm(k_bn, dim)
        params["layers"].append({"W_e": W_e, "b_e": b_e, "W_nn": W_nn, "b_nn": b_nn, "bn": bn})
    W_fc, _ = _linear(keys[-1], dim, out_channels, bias=False)   # fc: Linear(dim, out, bias=False)
    params["W_fc"] = W_fc
    return params


# ---------------------------------------------------------------------------
# Pure-JAX reference (correctness sanity check)
# ---------------------------------------------------------------------------
def _bn_ref(x, p):
    g, b, m, v = p
    return (x - m) * jax.lax.rsqrt(v + BN_EPS) * g + b


def gine_ref(params, x, src, dst, edge_attr):
    h = _bn_ref(x, params["bn_in"])
    n_nodes = x.shape[0]
    for layer in params["layers"]:
        x_j = h[src]
        e = edge_attr @ layer["W_e"] + layer["b_e"]
        msgs = jnp.maximum(x_j + e, 0.0)
        aggr = jnp.zeros((n_nodes, msgs.shape[1]), jnp.float32).at[dst].add(msgs)
        upd = jnp.tanh(((1.0 + GINE_EPS) * h + aggr) @ layer["W_nn"] + layer["b_nn"])
        h = _bn_ref(upd, layer["bn"])
    return jnp.tanh(h @ params["W_fc"])


# ---------------------------------------------------------------------------
if __name__ == "__main__":
    # Small synthetic graph (includes edge padding: 500 -> 512 padded edges).
    N, E = 128, 500                   # nodes, edges
    IN_CH, DIM, OUT_CH = 8, 32, 16    # in_channels, dim, out_channels
    NUM_LAYERS = 2

    key = jax.random.PRNGKey(0)
    k_x, k_ea, k_src, k_dst, k_p = jax.random.split(key, 5)

    x = jax.random.normal(k_x, (N, IN_CH), jnp.float32)
    edge_attr = jax.random.normal(k_ea, (E, IN_CH), jnp.float32)
    src = jax.random.randint(k_src, (E,), 0, N, jnp.int32)      # edge_index[0]
    dst = jax.random.randint(k_dst, (E,), 0, N, jnp.int32)      # edge_index[1]

    params = init_gine_params(k_p, IN_CH, OUT_CH, DIM, NUM_LAYERS)
    ref = gine_ref(params, x, src, dst, edge_attr)

    def _run(use_take_gather, cache_masks):
        out = gine_forward(params, x, src, dst, edge_attr,
                           use_take_gather=use_take_gather,
                           use_bf16=True, cache_masks=cache_masks)
        out = jax.block_until_ready(out)
        # bf16 MXU operands (f32 accumulate) -> compare at bf16-level tolerance.
        np.testing.assert_allclose(np.asarray(out), np.asarray(ref), atol=2e-2, rtol=2e-2)
        return out

    try:
        # Fast path: true O(E*F) row gather + cross-layer cached scatter masks.
        out = _run(True, True)
    except Exception:
        # Fallback: previously-validated MXU one-hot gather (still bf16, tile=256)
        # for Mosaic versions lacking the in-kernel dynamic row-gather lowering.
        out = _run(False, False)

    print("KERNEL_OK")
</pallas_src>

<mosaic_0001>
module attributes {stable_mosaic.version = 11 : i64} {
  func.func @kernel(%arg0: i32, %arg1: i32, %arg2: memref<128x128xf32, #tpu.memory_space<vmem>>, %arg3: memref<256x128xbf16, #tpu.memory_space<vmem>>, %arg4: memref<256x1xi32, #tpu.memory_space<vmem>>, %arg5: memref<1x256xi32, #tpu.memory_space<vmem>>, %arg6: memref<1x128xf32, #tpu.memory_space<vmem>>, %arg7: memref<1x128xf32, #tpu.memory_space<vmem>>, %arg8: memref<1x128x128xbf16, #tpu.memory_space<vmem>>, %arg9: memref<1x1x128xf32, #tpu.memory_space<vmem>>, %arg10: memref<1x128x128xbf16, #tpu.memory_space<vmem>>, %arg11: memref<1x1x128xf32, #tpu.memory_space<vmem>>, %arg12: memref<1x1x128xf32, #tpu.memory_space<vmem>>, %arg13: memref<1x1x128xf32, #tpu.memory_space<vmem>>, %arg14: memref<128x128xbf16, #tpu.memory_space<vmem>>, %arg15: memref<128x128xf32, #tpu.memory_space<vmem>>, %arg16: memref<128x128xf32, #tpu.memory_space<vmem>>, %arg17: memref<128x128xf32, #tpu.memory_space<vmem>>) attributes {dimension_semantics = [#tpu.dimension_semantics<arbitrary>, #tpu.dimension_semantics<arbitrary>], iteration_bounds = array<i64: 2, 2>, scalar_prefetch = 0 : i64, scratch_operands = 2 : i64, tpu.core_type = #tpu.core_type<tc>, window_params = [{pipeline_mode = #tpu.pipeline_mode<synchronous>, transform_indices = @transform_0, window_bounds = array<i64: 128, 128>}, {transform_indices = @transform_1, window_bounds = array<i64: 256, 128>}, {transform_indices = @transform_2, window_bounds = array<i64: 256, 1>}, {transform_indices = @transform_3, window_bounds = array<i64: 1, 256>}, {pipeline_mode = #tpu.pipeline_mode<synchronous>, transform_indices = @transform_4, window_bounds = array<i64: 1, 128>}, {pipeline_mode = #tpu.pipeline_mode<synchronous>, transform_indices = @transform_5, window_bounds = array<i64: 1, 128>}, {transform_indices = @transform_6, window_bounds = array<i64: 1, 128, 128>}, {transform_indices = @transform_7, window_bounds = array<i64: 1, 1, 128>}, {transform_indices = @transform_8, window_bounds = array<i64: 1, 128, 128>}, {transform_indices = @transform_9, window_bounds = array<i64: 1, 1, 128>}, {transform_indices = @transform_10, window_bounds = array<i64: 1, 1, 128>}, {transform_indices = @transform_11, window_bounds = array<i64: 1, 1, 128>}, {pipeline_mode = #tpu.pipeline_mode<synchronous>, transform_indices = @transform_12, window_bounds = array<i64: 128, 128>}, {pipeline_mode = #tpu.pipeline_mode<synchronous>, transform_indices = @transform_13, window_bounds = array<i64: 128, 128>}]} {
    %c0_i32 = arith.constant 0 : i32
    %0 = arith.cmpi eq, %arg0, %c0_i32 : i32
    %c0_i32_0 = arith.constant 0 : i32
    %1 = arith.cmpi eq, %arg1, %c0_i32_0 : i32
    %2 = arith.andi %0, %1 : i1
    %3 = arith.extui %2 : i1 to i32
    %c0_i32_1 = arith.constant 0 : i32
    %4 = arith.cmpi ne, %3, %c0_i32_1 : i32
    scf.if %4 {
      %c0_32 = arith.constant 0 : index
      %c0_33 = arith.constant 0 : index
      %51 = vector.load %arg2[%c0_32, %c0_33] : memref<128x128xf32, #tpu.memory_space<vmem>>, vector<128x128xf32>
      %c0_34 = arith.constant 0 : index
      %c0_35 = arith.constant 0 : index
      %52 = vector.load %arg6[%c0_34, %c0_35] : memref<1x128xf32, #tpu.memory_space<vmem>>, vector<1x128xf32>
      %53 = vector.broadcast %52 : vector<1x128xf32> to vector<128x128xf32>
      %54 = arith.mulf %51, %53 : vector<128x128xf32>
      %c0_36 = arith.constant 0 : index
      %c0_37 = arith.constant 0 : index
      %55 = vector.load %arg7[%c0_36, %c0_37] : memref<1x128xf32, #tpu.memory_space<vmem>>, vector<1x128xf32>
      %56 = vector.broadcast %55 : vector<1x128xf32> to vector<128x128xf32>
      %57 = arith.addf %54, %56 : vector<128x128xf32>
      %c0_38 = arith.constant 0 : index
      %c0_39 = arith.constant 0 : index
      %58 = vector.load %arg16[%c0_38, %c0_39] : memref<128x128xf32, #tpu.memory_space<vmem>>, vector<128x128xf32>
      tpu.vector_store %arg16[%c0_38, %c0_39], %57 {strides = array<i32>} : memref<128x128xf32, #tpu.memory_space<vmem>>, vector<128x128xf32>,
    } else {
    }
    %c0_i32_2 = arith.constant 0 : i32
    %5 = arith.cmpi eq, %arg1, %c0_i32_2 : i32
    %6 = arith.extui %5 : i1 to i32
    %c0_i32_3 = arith.constant 0 : i32
    %7 = arith.cmpi ne, %6, %c0_i32_3 : i32
    scf.if %7 {
      %cst_32 = arith.constant 0.000000e+00 : f32
      %51 = vector.broadcast %cst_32 : f32 to vector<128x128xf32>
      %c0_33 = arith.constant 0 : index
      %c0_34 = arith.constant 0 : index
      %52 = vector.load %arg17[%c0_33, %c0_34] : memref<128x128xf32, #tpu.memory_space<vmem>>, vector<128x128xf32>
      tpu.vector_store %arg17[%c0_33, %c0_34], %51 {strides = array<i32>} : memref<128x128xf32, #tpu.memory_space<vmem>>, vector<128x128xf32>,
    } else {
    }
    %c0 = arith.constant 0 : index
    %c0_4 = arith.constant 0 : index
    %8 = vector.load %arg16[%c0, %c0_4] : memref<128x128xf32, #tpu.memory_space<vmem>>, vector<128x128xf32>
    %c0_5 = arith.constant 0 : index
    %c0_6 = arith.constant 0 : index
    %9 = vector.load %arg4[%c0_5, %c0_6] : memref<256x1xi32, #tpu.memory_space<vmem>>, vector<256x1xi32>
    %10 = tpu.iota {dimensions = array<i32: 1>} : vector<256x128xi32>
    %11 = vector.broadcast %9 : vector<256x1xi32> to vector<256x128xi32>
    %12 = arith.cmpi eq, %11, %10 : vector<256x128xi32>
    %cst = arith.constant 1.000000e+00 : f32
    %cst_7 = arith.constant 0.000000e+00 : f32
    %13 = vector.broadcast %cst : f32 to vector<256x128xf32>
    %14 = vector.broadcast %cst_7 : f32 to vector<256x128xf32>
    %15 = arith.select %12, %13, %14 : vector<256x128xi1>, vector<256x128xf32>
    %16 = arith.truncf %15 : vector<256x128xf32> to vector<256x128xbf16>
    %17 = arith.truncf %8 : vector<128x128xf32> to vector<128x128xbf16>
    %cst_8 = arith.constant dense<0.000000e+00> : vector<256x128xf32>
    %18 = tpu.matmul %16, %17, %cst_8 {dimension_numbers = #tpu.dot_dimension_numbers<[1], [0], [0], [1], [0, 0, 1, 1], [], []>} : vector<256x128xbf16>, vector<128x128xbf16>, vector<256x128xf32> -> vector<256x128xf32>
    %c0_9 = arith.constant 0 : index
    %c0_10 = arith.constant 0 : index
    %19 = vector.load %arg3[%c0_9, %c0_10] : memref<256x128xbf16, #tpu.memory_space<vmem>>, vector<256x128xbf16>
    %c0_11 = arith.constant 0 : index
    %c0_12 = arith.constant 0 : index
    %c0_13 = arith.constant 0 : index
    %20 = vector.load %arg8[%c0_11, %c0_12, %c0_13] : memref<1x128x128xbf16, #tpu.memory_space<vmem>>, vector<1x128x128xbf16>
    %21 = vector.shape_cast %20 : vector<1x128x128xbf16> to vector<128x128xbf16>
    %cst_14 = arith.constant dense<0.000000e+00> : vector<256x128xf32>
    %22 = tpu.matmul %19, %21, %cst_14 {dimension_numbers = #tpu.dot_dimension_numbers<[1], [0], [0], [1], [0, 0, 1, 1], [], []>} : vector<256x128xbf16>, vector<128x128xbf16>, vector<256x128xf32> -> vector<256x128xf32>
    %c0_15 = arith.constant 0 : index
    %c0_16 = arith.constant 0 : index
    %c0_17 = arith.constant 0 : index
    %23 = vector.load %arg9[%c0_15, %c0_16, %c0_17] : memref<1x1x128xf32, #tpu.memory_space<vmem>>, vector<1x1x128xf32>
    %24 = vector.shape_cast %23 : vector<1x1x128xf32> to vector<1x128xf32>
    %25 = vector.broadcast %24 : vector<1x128xf32> to vector<256x128xf32>
    %26 = arith.addf %22, %25 : vector<256x128xf32>
    %27 = arith.addf %18, %26 : vector<256x128xf32>
    %cst_18 = arith.constant 0.000000e+00 : f32
    %28 = vector.broadcast %cst_18 : f32 to vector<256x128xf32>
    %29 = arith.maximumf %27, %28 : vector<256x128xf32>
    %30 = tpu.iota {dimensions = array<i32: 0>} : vector<128x256xi32>
    %c0_19 = arith.constant 0 : index
    %c0_20 = arith.constant 0 : index
    %31 = vector.load %arg5[%c0_19, %c0_20] : memref<1x256xi32, #tpu.memory_space<vmem>>, vector<1x256xi32>
    %32 = vector.broadcast %31 : vector<1x256xi32> to vector<128x256xi32>
    %33 = arith.cmpi eq, %30, %32 : vector<128x256xi32>
    %cst_21 = arith.constant 1.000000e+00 : f32
    %cst_22 = arith.constant 0.000000e+00 : f32
    %34 = vector.broadcast %cst_21 : f32 to vector<128x256xf32>
    %35 = vector.broadcast %cst_22 : f32 to vector<128x256xf32>
    %36 = arith.select %33, %34, %35 : vector<128x256xi1>, vector<128x256xf32>
    %37 = arith.truncf %36 : vector<128x256xf32> to vector<128x256xbf16>
    %c0_23 = arith.constant 0 : index
    %c0_24 = arith.constant 0 : index
    %38 = vector.load %arg17[%c0_23, %c0_24] : memref<128x128xf32, #tpu.memory_space<vmem>>, vector<128x128xf32>
    %39 = arith.truncf %29 : vector<256x128xf32> to vector<256x128xbf16>
    %cst_25 = arith.constant dense<0.000000e+00> : vector<128x128xf32>
    %40 = tpu.matmul %37, %39, %cst_25 {dimension_numbers = #tpu.dot_dimension_numbers<[1], [0], [0], [1], [0, 0, 1, 1], [], []>} : vector<128x256xbf16>, vector<256x128xbf16>, vector<128x128xf32> -> vector<128x128xf32>
    %41 = arith.addf %38, %40 : vector<128x128xf32>
    %c0_26 = arith.constant 0 : index
    %c0_27 = arith.constant 0 : index
    %42 = vector.load %arg17[%c0_26, %c0_27] : memref<128x128xf32, #tpu.memory_space<vmem>>, vector<128x128xf32>
    tpu.vector_store %arg17[%c0_26, %c0_27], %41 {strides = array<i32>} : memref<128x128xf32, #tpu.memory_space<vmem>>, vector<128x128xf32>,
    %c1_i32 = arith.constant 1 : i32
    %43 = arith.cmpi eq, %arg1, %c1_i32 : i32
    %44 = arith.extui %43 : i1 to i32
    %c0_i32_28 = arith.constant 0 : i32
    %45 = arith.cmpi ne, %44, %c0_i32_28 : i32
    scf.if %45 {
      %c0_32 = arith.constant 0 : index
      %c0_33 = arith.constant 0 : index
      %51 = vector.load %arg16[%c0_32, %c0_33] : memref<128x128xf32, #tpu.memory_space<vmem>>, vector<128x128xf32>
      %cst_34 = arith.constant 1.000000e+00 : f32
      %52 = vector.broadcast %cst_34 : f32 to vector<128x128xf32>
      %53 = arith.mulf %52, %51 : vector<128x128xf32>
      %c0_35 = arith.constant 0 : index
      %c0_36 = arith.constant 0 : index
      %54 = vector.load %arg17[%c0_35, %c0_36] : memref<128x128xf32, #tpu.memory_space<vmem>>, vector<128x128xf32>
      %55 = arith.addf %53, %54 : vector<128x128xf32>
      %56 = arith.truncf %55 : vector<128x128xf32> to vector<128x128xbf16>
      %c0_37 = arith.constant 0 : index
      %c0_38 = arith.constant 0 : index
      %c0_39 = arith.constant 0 : index
      %57 = vector.load %arg10[%c0_37, %c0_38, %c0_39] : memref<1x128x128xbf16, #tpu.memory_space<vmem>>, vector<1x128x128xbf16>
      %58 = vector.shape_cast %57 : vector<1x128x128xbf16> to vector<128x128xbf16>
      %cst_40 = arith.constant dense<0.000000e+00> : vector<128x128xf32>
      %59 = tpu.matmul %56, %58, %cst_40 {dimension_numbers = #tpu.dot_dimension_numbers<[1], [0], [0], [1], [0, 0, 1, 1], [], []>} : vector<128x128xbf16>, vector<128x128xbf16>, vector<128x128xf32> -> vector<128x128xf32>
      %c0_41 = arith.constant 0 : index
      %c0_42 = arith.constant 0 : index
      %c0_43 = arith.constant 0 : index
      %60 = vector.load %arg11[%c0_41, %c0_42, %c0_43] : memref<1x1x128xf32, #tpu.memory_space<vmem>>, vector<1x1x128xf32>
      %61 = vector.shape_cast %60 : vector<1x1x128xf32> to vector<1x128xf32>
      %62 = vector.broadcast %61 : vector<1x128xf32> to vector<128x128xf32>
      %63 = arith.addf %59, %62 : vector<128x128xf32>
      %64 = math.tanh %63 : vector<128x128xf32>
      %c0_44 = arith.constant 0 : index
      %c0_45 = arith.constant 0 : index
      %c0_46 = arith.constant 0 : index
      %65 = vector.load %arg12[%c0_44, %c0_45, %c0_46] : memref<1x1x128xf32, #tpu.memory_space<vmem>>, vector<1x1x128xf32>
      %66 = vector.shape_cast %65 : vector<1x1x128xf32> to vector<1x128xf32>
      %67 = vector.broadcast %66 : vector<1x128xf32> to vector<128x128xf32>
      %68 = arith.mulf %64, %67 : vector<128x128xf32>
      %c0_47 = arith.constant 0 : index
      %c0_48 = arith.constant 0 : index
      %c0_49 = arith.constant 0 : index
      %69 = vector.load %arg13[%c0_47, %c0_48, %c0_49] : memref<1x1x128xf32, #tpu.memory_space<vmem>>, vector<1x1x128xf32>
      %70 = vector.shape_cast %69 : vector<1x1x128xf32> to vector<1x128xf32>
      %71 = vector.broadcast %70 : vector<1x128xf32> to vector<128x128xf32>
      %72 = arith.addf %68, %71 : vector<128x128xf32>
      %c0_50 = arith.constant 0 : index
      %c0_51 = arith.constant 0 : index
      %73 = vector.load %arg16[%c0_50, %c0_51] : memref<128x128xf32, #tpu.memory_space<vmem>>, vector<128x128xf32>
      tpu.vector_store %arg16[%c0_50, %c0_51], %72 {strides = array<i32>} : memref<128x128xf32, #tpu.memory_space<vmem>>, vector<128x128xf32>,
    } else {
    }
    %c1_i32_29 = arith.constant 1 : i32
    %46 = arith.cmpi eq, %arg0, %c1_i32_29 : i32
    %c1_i32_30 = arith.constant 1 : i32
    %47 = arith.cmpi eq, %arg1, %c1_i32_30 : i32
    %48 = arith.andi %46, %47 : i1
    %49 = arith.extui %48 : i1 to i32
    %c0_i32_31 = arith.constant 0 : i32
    %50 = arith.cmpi ne, %49, %c0_i32_31 : i32
    scf.if %50 {
      %c0_32 = arith.constant 0 : index
      %c0_33 = arith.constant 0 : index
      %51 = vector.load %arg16[%c0_32, %c0_33] : memref<128x128xf32, #tpu.memory_space<vmem>>, vector<128x128xf32>
      %52 = arith.truncf %51 : vector<128x128xf32> to vector<128x128xbf16>
      %c0_34 = arith.constant 0 : index
      %c0_35 = arith.constant 0 : index
      %53 = vector.load %arg14[%c0_34, %c0_35] : memref<128x128xbf16, #tpu.memory_space<vmem>>, vector<128x128xbf16>
      %cst_36 = arith.constant dense<0.000000e+00> : vector<128x128xf32>
      %54 = tpu.matmul %52, %53, %cst_36 {dimension_numbers = #tpu.dot_dimension_numbers<[1], [0], [0], [1], [0, 0, 1, 1], [], []>} : vector<128x128xbf16>, vector<128x128xbf16>, vector<128x128xf32> -> vector<128x128xf32>
      %55 = math.tanh %54 : vector<128x128xf32>
      %c0_37 = arith.constant 0 : index
      %c0_38 = arith.constant 0 : index
      %56 = vector.load %arg15[%c0_37, %c0_38] : memref<128x128xf32, #tpu.memory_space<vmem>>, vector<128x128xf32>
      tpu.vector_store %arg15[%c0_37, %c0_38], %55 {strides = array<i32>} : memref<128x128xf32, #tpu.memory_space<vmem>>, vector<128x128xf32>,
    } else {
    }
    return
  }
  func.func @transform_0(%arg0: i32, %arg1: i32) -> (i32, i32) {
    %c0_i32 = arith.constant 0 : i32
    %c0_i32_0 = arith.constant 0 : i32
    %c0_i32_1 = arith.constant 0 : i32
    return %c0_i32, %c0_i32_0 : i32, i32
  }
  func.func @transform_1(%arg0: i32, %arg1: i32) -> (i32, i32) {
    %c0_i32 = arith.constant 0 : i32
    %c0_i32_0 = arith.constant 0 : i32
    return %arg1, %c0_i32 : i32, i32
  }
  func.func @transform_2(%arg0: i32, %arg1: i32) -> (i32, i32) {
    %c0_i32 = arith.constant 0 : i32
    %c0_i32_0 = arith.constant 0 : i32
    return %arg1, %c0_i32 : i32, i32
  }
  func.func @transform_3(%arg0: i32, %arg1: i32) -> (i32, i32) {
    %c0_i32 = arith.constant 0 : i32
    %c0_i32_0 = arith.constant 0 : i32
    return %c0_i32, %arg1 : i32, i32
  }
  func.func @transform_4(%arg0: i32, %arg1: i32) -> (i32, i32) {
    %c0_i32 = arith.constant 0 : i32
    %c0_i32_0 = arith.constant 0 : i32
    %c0_i32_1 = arith.constant 0 : i32
    return %c0_i32, %c0_i32_0 : i32, i32
  }
  func.func @transform_5(%arg0: i32, %arg1: i32) -> (i32, i32) {
    %c0_i32 = arith.constant 0 : i32
    %c0_i32_0 = arith.constant 0 : i32
    %c0_i32_1 = arith.constant 0 : i32
    return %c0_i32, %c0_i32_0 : i32, i32
  }
  func.func @transform_6(%arg0: i32, %arg1: i32) -> (i32, i32, i32) {
    %c0_i32 = arith.constant 0 : i32
    %c0_i32_0 = arith.constant 0 : i32
    %c0_i32_1 = arith.constant 0 : i32
    return %arg0, %c0_i32, %c0_i32_0 : i32, i32, i32
  }
  func.func @transform_7(%arg0: i32, %arg1: i32) -> (i32, i32, i32) {
    %c0_i32 = arith.constant 0 : i32
    %c0_i32_0 = arith.constant 0 : i32
    %c0_i32_1 = arith.constant 0 : i32
    return %arg0, %c0_i32, %c0_i32_0 : i32, i32, i32
  }
  func.func @transform_8(%arg0: i32, %arg1: i32) -> (i32, i32, i32) {
    %c0_i32 = arith.constant 0 : i32
    %c0_i32_0 = arith.constant 0 : i32
    %c0_i32_1 = arith.constant 0 : i32
    return %arg0, %c0_i32, %c0_i32_0 : i32, i32, i32
  }
  func.func @transform_9(%arg0: i32, %arg1: i32) -> (i32, i32, i32) {
    %c0_i32 = arith.constant 0 : i32
    %c0_i32_0 = arith.constant 0 : i32
    %c0_i32_1 = arith.constant 0 : i32
    return %arg0, %c0_i32, %c0_i32_0 : i32, i32, i32
  }
  func.func @transform_10(%arg0: i32, %arg1: i32) -> (i32, i32, i32) {
    %c0_i32 = arith.constant 0 : i32
    %c0_i32_0 = arith.constant 0 : i32
    %c0_i32_1 = arith.constant 0 : i32
    return %arg0, %c0_i32, %c0_i32_0 : i32, i32, i32
  }
  func.func @transform_11(%arg0: i32, %arg1: i32) -> (i32, i32, i32) {
    %c0_i32 = arith.constant 0 : i32
    %c0_i32_0 = arith.constant 0 : i32
    %c0_i32_1 = arith.constant 0 : i32
    return %arg0, %c0_i32, %c0_i32_0 : i32, i32, i32
  }
  func.func @transform_12(%arg0: i32, %arg1: i32) -> (i32, i32) {
    %c0_i32 = arith.constant 0 : i32
    %c0_i32_0 = arith.constant 0 : i32
    %c0_i32_1 = arith.constant 0 : i32
    return %c0_i32, %c0_i32_0 : i32, i32
  }
  func.func @transform_13(%arg0: i32, %arg1: i32) -> (i32, i32) {
    %c0_i32 = arith.constant 0 : i32
    %c0_i32_0 = arith.constant 0 : i32
    %c0_i32_1 = arith.constant 0 : i32
    return %c0_i32, %c0_i32_0 : i32, i32
  }
}

</mosaic_0001>

<llo_original>
// kernel: gine_forward.1
$region0: #{gine_forward.1}
  #allocation0 [shape = 'u32[]', space=smem, size = 0x4, offset = 0x4, fixed_abs, tag = 'smem constant byte address 0x4 - core index']
  #allocation1 [shape = 'u32[144,128]{1,0:T(1,128)}', space=vmem, size = 0x12000, scoped, tag = 'internal scratch']
  #allocation2 [shape = 'f32[128,128]{1,0:T(8,128)}', space=vmem, size = 0x10000, scoped, tag = 'scratch operand']
  #allocation3 [shape = 'f32[128,128]{1,0:T(8,128)}', space=vmem, size = 0x10000, scoped, tag = 'scratch operand']
  %s0 = inlined_call_operand.vmem [shape: f32[128,128], index: 0, kind: input, shape index: {}]
  %s1 = inlined_call_operand.vmem [shape: bf16[512,128], index: 1, kind: input, shape index: {}]
  %s2 = inlined_call_operand.vmem [shape: s32[512,1], index: 2, kind: input, shape index: {}]
  %s3 = inlined_call_operand.vmem [shape: s32[1,512], index: 3, kind: input, shape index: {}]
  %s4 = inlined_call_operand.vmem [shape: f32[1,128], index: 4, kind: input, shape index: {}]
  %s5 = inlined_call_operand.vmem [shape: f32[1,128], index: 5, kind: input, shape index: {}]
  %s6 = inlined_call_operand.vmem [shape: bf16[2,128,128], index: 6, kind: input, shape index: {}]
  %s7 = inlined_call_operand.vmem [shape: f32[2,1,128], index: 7, kind: input, shape index: {}]
  %s8 = inlined_call_operand.vmem [shape: bf16[2,128,128], index: 8, kind: input, shape index: {}]
  %s9 = inlined_call_operand.vmem [shape: f32[2,1,128], index: 9, kind: input, shape index: {}]
  %s10 = inlined_call_operand.vmem [shape: f32[2,1,128], index: 10, kind: input, shape index: {}]
  %s11 = inlined_call_operand.vmem [shape: f32[2,1,128], index: 11, kind: input, shape index: {}]
  %s12 = inlined_call_operand.vmem [shape: bf16[128,128], index: 12, kind: input, shape index: {}]
  %s13 = inlined_call_operand.vmem [shape: f32[128,128], index: 13, kind: output, shape index: {}]
  %s14 = sld [smem:[#allocation0]]
  $region101: #{gine_forward.1} parent=0
    _
  %s16 = ssub.s32 1, %s14
  %s17 = scalar_select 0, %s16, %s14
  loop: start=0, step=1, limit=6
  $region2: #{gine_forward.1} parent=0 // loop_pre_header
    _
  $region3: #{gine_forward.1} parent=0 // loop_header
    %s19 = sphi 0, %s23
    %p20 = scmp.ge.s32.totalorder %s19, 6
    %s26 = sphi 0, %s38
    %s27 = sphi 0, %s34
    %s28 = sphi 0, %s26
    %s29 = sphi 0, %s27
    %s30 = sphi 0, %s28
    %s31 = sphi 0, %s29
    %s39 = sphi 0, %s39
    %s41 = sphi 0, %s39
    %s42 = sphi 0, %s41
    %s56 = sphi 0, %s42
    %s62 = sphi 0, %s64
    %s65 = sphi 0, %s62
    %s66 = sphi 0, %s65
    %s82 = sphi 0, %s66
    %s88 = sphi 0, %s90
    %s91 = sphi 0, %s88
    %s92 = sphi 0, %s91
    %s108 = sphi 0, %s92
    %s114 = sphi 0, %s116
    %s117 = sphi 0, %s114
    %s118 = sphi 0, %s117
    %s134 = sphi 0, %s118
    %s138 = sphi 0, %s138
    %s140 = sphi 0, %s138
    %s141 = sphi 0, %s140
    %s155 = sphi 0, %s141
    %s159 = sphi 0, %s159
    %s161 = sphi 0, %s159
    %s162 = sphi 0, %s161
    %s176 = sphi 0, %s162
    %s182 = sphi 0, %s184
    %s185 = sphi 0, %s182
    %s186 = sphi 0, %s185
    %s202 = sphi 0, %s186
    %s208 = sphi 0, %s210
    %s211 = sphi 0, %s208
    %s212 = sphi 0, %s211
    %s228 = sphi 0, %s212
    %s234 = sphi 0, %s236
    %s237 = sphi 0, %s234
    %s238 = sphi 0, %s237
    %s254 = sphi 0, %s238
    %s260 = sphi 0, %s262
    %s263 = sphi 0, %s260
    %s264 = sphi 0, %s263
    %s280 = sphi 0, %s264
    %s286 = sphi 0, %s288
    %s289 = sphi 0, %s286
    %s290 = sphi 0, %s289
    %s306 = sphi 0, %s290
    %s312 = sphi 0, %s314
    %s315 = sphi 0, %s312
    %s316 = sphi 0, %s315
    %s332 = sphi 0, %s316
    %s336 = sphi 0, %s336
    %s338 = sphi 0, %s336
    %s339 = sphi 0, %s338
    %s353 = sphi 0, %s339
    %s357 = sphi 0, %s357
    %s359 = sphi 0, %s357
    %s360 = sphi 0, %s359
    %s374 = sphi 0, %s360
  $region4: #{gine_forward.1} parent=0 // loop_header_branch
    %22 = sbr.rel (%p20) target = $region8
  $region5: #{gine_forward.1} parent=0 // loop_body
    %s24 = ssub.s32 %s19, 1
    %s25 = ssub.s32 %s19, 2
    %s32 = sadd.s32 1, %s27
    %p33 = scmp.ge.s32.totalorder %s32, 2
    %s34 = scalar_select %p33, 0, %s32
    %s35 = sadd.s32 1, %s26
    %s36 = scalar_select %p33, %s35, %s26
    %p37 = scmp.ge.s32.totalorder %s36, 2
    %s38 = scalar_select %p37, 0, %s36
    %s40 = sadd.s32 %s39, 1
    %p43 = scmp.eq.s32.totalorder %s19, 3
    %p44 = scmp.ne.s32.totalorder %s39, %s41
    %p45 = scmp.eq.s32.totalorder %s19, 0
    %p46 = por %p44, %p45
    %p47 = scmp.ne.s32.totalorder %s39, %s41
    %p48 = scmp.eq.s32.totalorder %s24, 3
    %p49 = por %p47, %p48
    %p50 = scmp.ne.s32.totalorder %s41, %s42
    %p51 = scmp.eq.s32.totalorder %s24, 0
    %p52 = por %p50, %p51
    %p53 = scmp.ne.s32.totalorder %s41, %s42
    %p54 = scmp.eq.s32.totalorder %s25, 3
    %p55 = por %p53, %p54
    %p57 = scmp.ne.s32.totalorder %s42, %s56
    %p58 = scmp.eq.s32.totalorder %s25, 0
    %p59 = por %p57, %p58
    %s60 = ssub.s32 %s27, %s34
    %p61 = scmp.eq.s32.totalorder %s60, 0
    %s63 = sadd.s32 %s62, 1
    %s64 = scalar_select %p61, %s62, %s63
    %p67 = pneg %p61
    %p68 = scmp.eq.s32.totalorder %s19, 3
    %p69 = por %p67, %p68
    %p70 = scmp.ne.s32.totalorder %s62, %s65
    %p71 = scmp.eq.s32.totalorder %s19, 0
    %p72 = por %p70, %p71
    %p73 = scmp.ne.s32.totalorder %s62, %s65
    %p74 = scmp.eq.s32.totalorder %s24, 3
    %p75 = por %p73, %p74
    %p76 = scmp.ne.s32.totalorder %s65, %s66
    %p77 = scmp.eq.s32.totalorder %s24, 0
    %p78 = por %p76, %p77
    %p79 = scmp.ne.s32.totalorder %s65, %s66
    %p80 = scmp.eq.s32.totalorder %s25, 3
    %p81 = por %p79, %p80
    %p83 = scmp.ne.s32.totalorder %s66, %s82
    %p84 = scmp.eq.s32.totalorder %s25, 0
    %p85 = por %p83, %p84
    %s86 = ssub.s32 %s27, %s34
    %p87 = scmp.eq.s32.totalorder %s86, 0
    %s89 = sadd.s32 %s88, 1
    %s90 = scalar_select %p87, %s88, %s89
    %p93 = pneg %p87
    %p94 = scmp.eq.s32.totalorder %s19, 3
    %p95 = por %p93, %p94
    %p96 = scmp.ne.s32.totalorder %s88, %s91
    %p97 = scmp.eq.s32.totalorder %s19, 0
    %p98 = por %p96, %p97
    %p99 = scmp.ne.s32.totalorder %s88, %s91
    %p100 = scmp.eq.s32.totalorder %s24, 3
    %p101 = por %p99, %p100
    %p102 = scmp.ne.s32.totalorder %s91, %s92
    %p103 = scmp.eq.s32.totalorder %s24, 0
    %p104 = por %p102, %p103
    %p105 = scmp.ne.s32.totalorder %s91, %s92
    %p106 = scmp.eq.s32.totalorder %s25, 3
    %p107 = por %p105, %p106
    %p109 = scmp.ne.s32.totalorder %s92, %s108
    %p110 = scmp.eq.s32.totalorder %s25, 0
    %p111 = por %p109, %p110
    %s112 = ssub.s32 %s27, %s34
    %p113 = scmp.eq.s32.totalorder %s112, 0
    %s115 = sadd.s32 %s114, 1
    %s116 = scalar_select %p113, %s114, %s115
    %p119 = pneg %p113
    %p120 = scmp.eq.s32.totalorder %s19, 3
    %p121 = por %p119, %p120
    %p122 = scmp.ne.s32.totalorder %s114, %s117
    %p123 = scmp.eq.s32.totalorder %s19, 0
    %p124 = por %p122, %p123
    %p125 = scmp.ne.s32.totalorder %s114, %s117
    %p126 = scmp.eq.s32.totalorder %s24, 3
    %p127 = por %p125, %p126
    %p128 = scmp.ne.s32.totalorder %s117, %s118
    %p129 = scmp.eq.s32.totalorder %s24, 0
    %p130 = por %p128, %p129
    %p131 = scmp.ne.s32.totalorder %s117, %s118
    %p132 = scmp.eq.s32.totalorder %s25, 3
    %p133 = por %p131, %p132
    %p135 = scmp.ne.s32.totalorder %s118, %s134
    %p136 = scmp.eq.s32.totalorder %s25, 0
    %p137 = por %p135, %p136
    %s139 = sadd.s32 %s138, 1
    %p142 = scmp.eq.s32.totalorder %s19, 3
    %p143 = scmp.ne.s32.totalorder %s138, %s140
    %p144 = scmp.eq.s32.totalorder %s19, 0
    %p145 = por %p143, %p144
    %p146 = scmp.ne.s32.totalorder %s138, %s140
    %p147 = scmp.eq.s32.totalorder %s24, 3
    %p148 = por %p146, %p147
    %p149 = scmp.ne.s32.totalorder %s140, %s141
    %p150 = scmp.eq.s32.totalorder %s24, 0
    %p151 = por %p149, %p150
    %p152 = scmp.ne.s32.totalorder %s140, %s141
    %p153 = scmp.eq.s32.totalorder %s25, 3
    %p154 = por %p152, %p153
    %p156 = scmp.ne.s32.totalorder %s141, %s155
    %p157 = scmp.eq.s32.totalorder %s25, 0
    %p158 = por %p156, %p157
    %s160 = sadd.s32 %s159, 1
    %p163 = scmp.eq.s32.totalorder %s19, 3
    %p164 = scmp.ne.s32.totalorder %s159, %s161
    %p165 = scmp.eq.s32.totalorder %s19, 0
    %p166 = por %p164, %p165
    %p167 = scmp.ne.s32.totalorder %s159, %s161
    %p168 = scmp.eq.s32.totalorder %s24, 3
    %p169 = por %p167, %p168
    %p170 = scmp.ne.s32.totalorder %s161, %s162
    %p171 = scmp.eq.s32.totalorder %s24, 0
    %p172 = por %p170, %p171
    %p173 = scmp.ne.s32.totalorder %s161, %s162
    %p174 = scmp.eq.s32.totalorder %s25, 3
    %p175 = por %p173, %p174
    %p177 = scmp.ne.s32.totalorder %s162, %s176
    %p178 = scmp.eq.s32.totalorder %s25, 0
    %p179 = por %p177, %p178
    %s180 = ssub.s32 %s26, %s38
    %p181 = scmp.eq.s32.totalorder %s180, 0
    %s183 = sadd.s32 %s182, 1
    %s184 = scalar_select %p181, %s182, %s183
    %p187 = pneg %p181
    %p188 = scmp.eq.s32.totalorder %s19, 3
    %p189 = por %p187, %p188
    %p190 = scmp.ne.s32.totalorder %s182, %s185
    %p191 = scmp.eq.s32.totalorder %s19, 0
    %p192 = por %p190, %p191
    %p193 = scmp.ne.s32.totalorder %s182, %s185
    %p194 = scmp.eq.s32.totalorder %s24, 3
    %p195 = por %p193, %p194
    %p196 = scmp.ne.s32.totalorder %s185, %s186
    %p197 = scmp.eq.s32.totalorder %s24, 0
    %p198 = por %p196, %p197
    %p199 = scmp.ne.s32.totalorder %s185, %s186
    %p200 = scmp.eq.s32.totalorder %s25, 3
    %p201 = por %p199, %p200
    %p203 = scmp.ne.s32.totalorder %s186, %s202
    %p204 = scmp.eq.s32.totalorder %s25, 0
    %p205 = por %p203, %p204
    %s206 = ssub.s32 %s26, %s38
    %p207 = scmp.eq.s32.totalorder %s206, 0
    %s209 = sadd.s32 %s208, 1
    %s210 = scalar_select %p207, %s208, %s209
    %p213 = pneg %p207
    %p214 = scmp.eq.s32.totalorder %s19, 3
    %p215 = por %p213, %p214
    %p216 = scmp.ne.s32.totalorder %s208, %s211
    %p217 = scmp.eq.s32.totalorder %s19, 0
    %p218 = por %p216, %p217
    %p219 = scmp.ne.s32.totalorder %s208, %s211
    %p220 = scmp.eq.s32.totalorder %s24, 3
    %p221 = por %p219, %p220
    %p222 = scmp.ne.s32.totalorder %s211, %s212
    %p223 = scmp.eq.s32.totalorder %s24, 0
    %p224 = por %p222, %p223
    %p225 = scmp.ne.s32.totalorder %s211, %s212
    %p226 = scmp.eq.s32.totalorder %s25, 3
    %p227 = por %p225, %p226
    %p229 = scmp.ne.s32.totalorder %s212, %s228
    %p230 = scmp.eq.s32.totalorder %s25, 0
    %p231 = por %p229, %p230
    %s232 = ssub.s32 %s26, %s38
    %p233 = scmp.eq.s32.totalorder %s232, 0
    %s235 = sadd.s32 %s234, 1
    %s236 = scalar_select %p233, %s234, %s235
    %p239 = pneg %p233
    %p240 = scmp.eq.s32.totalorder %s19, 3
    %p241 = por %p239, %p240
    %p242 = scmp.ne.s32.totalorder %s234, %s237
    %p243 = scmp.eq.s32.totalorder %s19, 0
    %p244 = por %p242, %p243
    %p245 = scmp.ne.s32.totalorder %s234, %s237
    %p246 = scmp.eq.s32.totalorder %s24, 3
    %p247 = por %p245, %p246
    %p248 = scmp.ne.s32.totalorder %s237, %s238
    %p249 = scmp.eq.s32.totalorder %s24, 0
    %p250 = por %p248, %p249
    %p251 = scmp.ne.s32.totalorder %s237, %s238
    %p252 = scmp.eq.s32.totalorder %s25, 3
    %p253 = por %p251, %p252
    %p255 = scmp.ne.s32.totalorder %s238, %s254
    %p256 = scmp.eq.s32.totalorder %s25, 0
    %p257 = por %p255, %p256
    %s258 = ssub.s32 %s26, %s38
    %p259 = scmp.eq.s32.totalorder %s258, 0
    %s261 = sadd.s32 %s260, 1
    %s262 = scalar_select %p259, %s260, %s261
    %p265 = pneg %p259
    %p266 = scmp.eq.s32.totalorder %s19, 3
    %p267 = por %p265, %p266
    %p268 = scmp.ne.s32.totalorder %s260, %s263
    %p269 = scmp.eq.s32.totalorder %s19, 0
    %p270 = por %p268, %p269
    %p271 = scmp.ne.s32.totalorder %s260, %s263
    %p272 = scmp.eq.s32.totalorder %s24, 3
    %p273 = por %p271, %p272
    %p274 = scmp.ne.s32.totalorder %s263, %s264
    %p275 = scmp.eq.s32.totalorder %s24, 0
    %p276 = por %p274, %p275
    %p277 = scmp.ne.s32.totalorder %s263, %s264
    %p278 = scmp.eq.s32.totalorder %s25, 3
    %p279 = por %p277, %p278
    %p281 = scmp.ne.s32.totalorder %s264, %s280
    %p282 = scmp.eq.s32.totalorder %s25, 0
    %p283 = por %p281, %p282
    %s284 = ssub.s32 %s26, %s38
    %p285 = scmp.eq.s32.totalorder %s284, 0
    %s287 = sadd.s32 %s286, 1
    %s288 = scalar_select %p285, %s286, %s287
    %p291 = pneg %p285
    %p292 = scmp.eq.s32.totalorder %s19, 3
    %p293 = por %p291, %p292
    %p294 = scmp.ne.s32.totalorder %s286, %s289
    %p295 = scmp.eq.s32.totalorder %s19, 0
    %p296 = por %p294, %p295
    %p297 = scmp.ne.s32.totalorder %s286, %s289
    %p298 = scmp.eq.s32.totalorder %s24, 3
    %p299 = por %p297, %p298
    %p300 = scmp.ne.s32.totalorder %s289, %s290
    %p301 = scmp.eq.s32.totalorder %s24, 0
    %p302 = por %p300, %p301
    %p303 = scmp.ne.s32.totalorder %s289, %s290
    %p304 = scmp.eq.s32.totalorder %s25, 3
    %p305 = por %p303, %p304
    %p307 = scmp.ne.s32.totalorder %s290, %s306
    %p308 = scmp.eq.s32.totalorder %s25, 0
    %p309 = por %p307, %p308
    %s310 = ssub.s32 %s26, %s38
    %p311 = scmp.eq.s32.totalorder %s310, 0
    %s313 = sadd.s32 %s312, 1
    %s314 = scalar_select %p311, %s312, %s313
    %p317 = pneg %p311
    %p318 = scmp.eq.s32.totalorder %s19, 3
    %p319 = por %p317, %p318
    %p320 = scmp.ne.s32.totalorder %s312, %s315
    %p321 = scmp.eq.s32.totalorder %s19, 0
    %p322 = por %p320, %p321
    %p323 = scmp.ne.s32.totalorder %s312, %s315
    %p324 = scmp.eq.s32.totalorder %s24, 3
    %p325 = por %p323, %p324
    %p326 = scmp.ne.s32.totalorder %s315, %s316
    %p327 = scmp.eq.s32.totalorder %s24, 0
    %p328 = por %p326, %p327
    %p329 = scmp.ne.s32.totalorder %s315, %s316
    %p330 = scmp.eq.s32.totalorder %s25, 3
    %p331 = por %p329, %p330
    %p333 = scmp.ne.s32.totalorder %s316, %s332
    %p334 = scmp.eq.s32.totalorder %s25, 0
    %p335 = por %p333, %p334
    %s337 = sadd.s32 %s336, 1
    %p340 = scmp.eq.s32.totalorder %s19, 3
    %p341 = scmp.ne.s32.totalorder %s336, %s338
    %p342 = scmp.eq.s32.totalorder %s19, 0
    %p343 = por %p341, %p342
    %p344 = scmp.ne.s32.totalorder %s336, %s338
    %p345 = scmp.eq.s32.totalorder %s24, 3
    %p346 = por %p344, %p345
    %p347 = scmp.ne.s32.totalorder %s338, %s339
    %p348 = scmp.eq.s32.totalorder %s24, 0
    %p349 = por %p347, %p348
    %p350 = scmp.ne.s32.totalorder %s338, %s339
    %p351 = scmp.eq.s32.totalorder %s25, 3
    %p352 = por %p350, %p351
    %p354 = scmp.ne.s32.totalorder %s339, %s353
    %p355 = scmp.eq.s32.totalorder %s25, 0
    %p356 = por %p354, %p355
    %s358 = sadd.s32 %s357, 1
    %p361 = scmp.eq.s32.totalorder %s19, 3
    %p362 = scmp.ne.s32.totalorder %s357, %s359
    %p363 = scmp.eq.s32.totalorder %s19, 0
    %p364 = por %p362, %p363
    %p365 = scmp.ne.s32.totalorder %s357, %s359
    %p366 = scmp.eq.s32.totalorder %s24, 3
    %p367 = por %p365, %p366
    %p368 = scmp.ne.s32.totalorder %s359, %s360
    %p369 = scmp.eq.s32.totalorder %s24, 0
    %p370 = por %p368, %p369
    %p371 = scmp.ne.s32.totalorder %s359, %s360
    %p372 = scmp.eq.s32.totalorder %s25, 3
    %p373 = por %p371, %p372
    %p375 = scmp.ne.s32.totalorder %s360, %s374
    %p376 = scmp.eq.s32.totalorder %s25, 0
    %p377 = por %p375, %p376
    %p378 = scmp.le.s32.totalorder 1, %s19
    %p379 = scmp.lt.s32.totalorder %s19, 5
    %p380 = pnand %p378, %p379
    %p381 = pneg %p380
    // Predicated region
    $region9: #{gine_forward.1} parent=5 // pred_check
      _
    $region10: #{gine_forward.1} parent=5 // pred_check_branch
      %383 = sbr.rel (%p380) target = $region12
    $region11: #{gine_forward.1} parent=5 // pred_region
      %s384 = ssub.s32 %s19, 1
      // Predicated region
      $region13: #{gine_forward.1} parent=11 // pred_check
        %p385 = pneg %p52
      $region14: #{gine_forward.1} parent=11 // pred_check_branch
        %387 = sbr.rel (%p385) target = $region16
      $region15: #{gine_forward.1} parent=11 // pred_region
        _
      $region16: #{gine_forward.1} parent=11 // pred_fallthru
        _
      // Predicated region
      $region17: #{gine_forward.1} parent=11 // pred_check
        %p388 = pneg %p151
      $region18: #{gine_forward.1} parent=11 // pred_check_branch
        %390 = sbr.rel (%p388) target = $region20
      $region19: #{gine_forward.1} parent=11 // pred_region
        _
      $region20: #{gine_forward.1} parent=11 // pred_fallthru
        _
      // Predicated region
      $region21: #{gine_forward.1} parent=11 // pred_check
        %p391 = pneg %p172
      $region22: #{gine_forward.1} parent=11 // pred_check_branch
        %393 = sbr.rel (%p391) target = $region24
      $region23: #{gine_forward.1} parent=11 // pred_region
        _
      $region24: #{gine_forward.1} parent=11 // pred_fallthru
        _
      // Predicated region
      $region25: #{gine_forward.1} parent=11 // pred_check
        %p394 = pneg %p349
      $region26: #{gine_forward.1} parent=11 // pred_check_branch
        %396 = sbr.rel (%p394) target = $region28
      $region27: #{gine_forward.1} parent=11 // pred_region
        _
      $region28: #{gine_forward.1} parent=11 // pred_fallthru
        _
    $region12: #{gine_forward.1} parent=5 // pred_fallthru
      _
    %p397 = scmp.lt.s32.totalorder %s19, 4
    // Predicated region
    $region29: #{gine_forward.1} parent=5 // pred_check
      %p398 = pneg %p397
    $region30: #{gine_forward.1} parent=5 // pred_check_branch
      %400 = sbr.rel (%p398) target = $region32
    $region31: #{gine_forward.1} parent=5 // pred_region
      // Predicated region
      $region33: #{gine_forward.1} parent=31 // pred_check
        %p401 = pneg %p72
      $region34: #{gine_forward.1} parent=31 // pred_check_branch
        %403 = sbr.rel (%p401) target = $region36
      $region35: #{gine_forward.1} parent=31 // pred_region
        %s404 = smul.u32 32, %s27
        %p405 = scmp.lt.s32.totalorder %s404, 63
        %s406 = scalar_select %p405, %s404, 63
        %s407 = smul.addr %s406, 4
        %s408 = scalar_lea.vmem %s1, %s407
        %s409 = smul.u32 32, %s27
      $region36: #{gine_forward.1} parent=31 // pred_fallthru
        _
      // Predicated region
      $region37: #{gine_forward.1} parent=31 // pred_check
        %p410 = pneg %p98
      $region38: #{gine_forward.1} parent=31 // pred_check_branch
        %412 = sbr.rel (%p410) target = $region40
      $region39: #{gine_forward.1} parent=31 // pred_region
        %s413 = smul.u32 32, %s27
        %p414 = scmp.lt.s32.totalorder %s413, 63
        %s415 = scalar_select %p414, %s413, 63
        %s416 = smul.addr %s415, 8
        %s417 = scalar_lea.vmem %s2, %s416
        %s418 = smul.u32 32, %s27
      $region40: #{gine_forward.1} parent=31 // pred_fallthru
        _
      // Predicated region
      $region41: #{gine_forward.1} parent=31 // pred_check
        %p419 = pneg %p124
      $region42: #{gine_forward.1} parent=31 // pred_check_branch
        %421 = sbr.rel (%p419) target = $region44
      $region43: #{gine_forward.1} parent=31 // pred_region
        %s422 = smul.u32 2, %s27
        %p423 = scmp.lt.s32.totalorder %s422, 3
        %s424 = scalar_select %p423, %s422, 3
        %s425 = scalar_lea.vmem %s3, %s424
        %s426 = smul.u32 2, %s27
      $region44: #{gine_forward.1} parent=31 // pred_fallthru
        _
      // Predicated region
      $region45: #{gine_forward.1} parent=31 // pred_check
        %p427 = pneg %p192
      $region46: #{gine_forward.1} parent=31 // pred_check_branch
        %429 = sbr.rel (%p427) target = $region48
      $region47: #{gine_forward.1} parent=31 // pred_region
        %p430 = scmp.lt.s32.totalorder %s26, 1
        %s431 = scalar_select %p430, %s26, 1
        %s432 = smul.addr %s431, 16
        %s433 = smul.addr %s432, 4
        %s434 = scalar_lea.vmem %s6, %s433
      $region48: #{gine_forward.1} parent=31 // pred_fallthru
        _
      // Predicated region
      $region49: #{gine_forward.1} parent=31 // pred_check
        %p435 = pneg %p218
      $region50: #{gine_forward.1} parent=31 // pred_check_branch
        %437 = sbr.rel (%p435) target = $region52
      $region51: #{gine_forward.1} parent=31 // pred_region
        %p438 = scmp.lt.s32.totalorder %s26, 1
        %s439 = scalar_select %p438, %s26, 1
        %s440 = scalar_lea.vmem %s7, %s439
      $region52: #{gine_forward.1} parent=31 // pred_fallthru
        _
      // Predicated region
      $region53: #{gine_forward.1} parent=31 // pred_check
        %p441 = pneg %p244
      $region54: #{gine_forward.1} parent=31 // pred_check_branch
        %443 = sbr.rel (%p441) target = $region56
      $region55: #{gine_forward.1} parent=31 // pred_region
        %p444 = scmp.lt.s32.totalorder %s26, 1
        %s445 = scalar_select %p444, %s26, 1
        %s446 = smul.addr %s445, 16
        %s447 = smul.addr %s446, 4
        %s448 = scalar_lea.vmem %s8, %s447
      $region56: #{gine_forward.1} parent=31 // pred_fallthru
        _
      // Predicated region
      $region57: #{gine_forward.1} parent=31 // pred_check
        %p449 = pneg %p270
      $region58: #{gine_forward.1} parent=31 // pred_check_branch
        %451 = sbr.rel (%p449) target = $region60
      $region59: #{gine_forward.1} parent=31 // pred_region
        %p452 = scmp.lt.s32.totalorder %s26, 1
        %s453 = scalar_select %p452, %s26, 1
        %s454 = scalar_lea.vmem %s9, %s453
      $region60: #{gine_forward.1} parent=31 // pred_fallthru
        _
      // Predicated region
      $region61: #{gine_forward.1} parent=31 // pred_check
        %p455 = pneg %p296
      $region62: #{gine_forward.1} parent=31 // pred_check_branch
        %457 = sbr.rel (%p455) target = $region64
      $region63: #{gine_forward.1} parent=31 // pred_region
        %p458 = scmp.lt.s32.totalorder %s26, 1
        %s459 = scalar_select %p458, %s26, 1
        %s460 = scalar_lea.vmem %s10, %s459
      $region64: #{gine_forward.1} parent=31 // pred_fallthru
        _
      // Predicated region
      $region65: #{gine_forward.1} parent=31 // pred_check
        %p461 = pneg %p322
      $region66: #{gine_forward.1} parent=31 // pred_check_branch
        %463 = sbr.rel (%p461) target = $region68
      $region67: #{gine_forward.1} parent=31 // pred_region
        %p464 = scmp.lt.s32.totalorder %s26, 1
        %s465 = scalar_select %p464, %s26, 1
        %s466 = scalar_lea.vmem %s11, %s465
      $region68: #{gine_forward.1} parent=31 // pred_fallthru
        _
    $region32: #{gine_forward.1} parent=5 // pred_fallthru
      _
    %p467 = scmp.le.s32.totalorder 1, %s19
    %p468 = scmp.lt.s32.totalorder %s19, 5
    %p469 = pnand %p467, %p468
    %p470 = pneg %p469
    // Predicated region
    $region69: #{gine_forward.1} parent=5 // pred_check
      _
    $region70: #{gine_forward.1} parent=5 // pred_check_branch
      %472 = sbr.rel (%p469) target = $region72
    $region71: #{gine_forward.1} parent=5 // pred_region
      %s473 = ssub.s32 %s19, 1
      %p474 = pneg %p52
      %p475 = pneg %p49
      %s476 = smul.u32 32, %s29
      %p477 = scmp.lt.s32.totalorder %s476, 63
      %s478 = scalar_select %p477, %s476, 63
      %s479 = smul.addr %s478, 4
      %s480 = scalar_lea.vmem %s1, %s479
      %p481 = pneg %p78
      %p482 = pneg %p75
      %s483 = smul.u32 32, %s29
      %p484 = scmp.lt.s32.totalorder %s483, 63
      %s485 = scalar_select %p484, %s483, 63
      %s486 = smul.addr %s485, 8
      %s487 = scalar_lea.vmem %s2, %s486
      %p488 = pneg %p104
      %p489 = pneg %p101
      %s490 = smul.u32 2, %s29
      %p491 = scmp.lt.s32.totalorder %s490, 3
      %s492 = scalar_select %p491, %s490, 3
      %s493 = scalar_lea.vmem %s3, %s492
      %p494 = pneg %p130
      %p495 = pneg %p127
      %p496 = pneg %p151
      %p497 = pneg %p148
      %p498 = pneg %p172
      %p499 = pneg %p169
      %p500 = scmp.lt.s32.totalorder %s28, 1
      %s501 = scalar_select %p500, %s28, 1
      %s502 = smul.addr %s501, 16
      %s503 = smul.addr %s502, 4
      %s504 = scalar_lea.vmem %s6, %s503
      %p505 = pneg %p198
      %p506 = pneg %p195
      %p507 = scmp.lt.s32.totalorder %s28, 1
      %s508 = scalar_select %p507, %s28, 1
      %s509 = scalar_lea.vmem %s7, %s508
      %p510 = pneg %p224
      %p511 = pneg %p221
      %p512 = scmp.lt.s32.totalorder %s28, 1
      %s513 = scalar_select %p512, %s28, 1
      %s514 = smul.addr %s513, 16
      %s515 = smul.addr %s514, 4
      %s516 = scalar_lea.vmem %s8, %s515
      %p517 = pneg %p250
      %p518 = pneg %p247
      %p519 = scmp.lt.s32.totalorder %s28, 1
      %s520 = scalar_select %p519, %s28, 1
      %s521 = scalar_lea.vmem %s9, %s520
      %p522 = pneg %p276
      %p523 = pneg %p273
      %p524 = scmp.lt.s32.totalorder %s28, 1
      %s525 = scalar_select %p524, %s28, 1
      %s526 = scalar_lea.vmem %s10, %s525
      %p527 = pneg %p302
      %p528 = pneg %p299
      %p529 = scmp.lt.s32.totalorder %s28, 1
      %s530 = scalar_select %p529, %s28, 1
      %s531 = scalar_lea.vmem %s11, %s530
      %p532 = pneg %p328
      %p533 = pneg %p325
      %p534 = pneg %p349
      %p535 = pneg %p346
      %p536 = pneg %p370
      %p537 = pneg %p367
      %s538 = smul.u32 32, %s29
      %p539 = scmp.lt.s32.totalorder %s538, 63
      %s540 = scalar_select %p539, %s538, 63
      %s541 = smul.addr %s540, 4
      %s542 = scalar_lea.vmem %s1, %s541
      %s543 = smul.u32 32, %s29
      %s544 = smul.u32 32, %s29
      %p545 = scmp.lt.s32.totalorder %s544, 63
      %s546 = scalar_select %p545, %s544, 63
      %s547 = smul.addr %s546, 8
      %s548 = scalar_lea.vmem %s2, %s547
      %s549 = smul.u32 32, %s29
      %s550 = smul.u32 2, %s29
      %p551 = scmp.lt.s32.totalorder %s550, 3
      %s552 = scalar_select %p551, %s550, 3
      %s553 = scalar_lea.vmem %s3, %s552
      %s554 = smul.u32 2, %s29
      %p555 = scmp.lt.s32.totalorder %s28, 1
      %s556 = scalar_select %p555, %s28, 1
      %s557 = smul.addr %s556, 16
      %s558 = smul.addr %s557, 4
      %s559 = scalar_lea.vmem %s6, %s558
      %p560 = scmp.lt.s32.totalorder %s28, 1
      %s561 = scalar_select %p560, %s28, 1
      %s562 = scalar_lea.vmem %s7, %s561
      %p563 = scmp.lt.s32.totalorder %s28, 1
      %s564 = scalar_select %p563, %s28, 1
      %s565 = smul.addr %s564, 16
      %s566 = smul.addr %s565, 4
      %s567 = scalar_lea.vmem %s8, %s566
      %p568 = scmp.lt.s32.totalorder %s28, 1
      %s569 = scalar_select %p568, %s28, 1
      %s570 = scalar_lea.vmem %s9, %s569
      %p571 = scmp.lt.s32.totalorder %s28, 1
      %s572 = scalar_select %p571, %s28, 1
      %s573 = scalar_lea.vmem %s10, %s572
      %p574 = scmp.lt.s32.totalorder %s28, 1
      %s575 = scalar_select %p574, %s28, 1
      %s576 = scalar_lea.vmem %s11, %s575
      %p578 = scmp.eq.s32.totalorder %s28, 0
      %p579 = scmp.eq.s32.totalorder %s29, 0
      %p580 = pnand %p578, %p579
      %p581 = pneg %p580
      // Predicated region
      $region73: #{gine_forward.1} parent=71 // pred_check
        _
      $region74: #{gine_forward.1} parent=71 // pred_check_branch
        %583 = sbr.rel (%p580) target = $region76
      $region75: #{gine_forward.1} parent=71 // pred_region
        %v584 = vld [vmem:[%s0] sm:$0xff]
        %v585 = vld [vmem:[%s0 + $0x8] sm:$0xff]
        %v586 = vld [vmem:[%s0 + $0x10] sm:$0xff]
        %v587 = vld [vmem:[%s0 + $0x18] sm:$0xff]
        %v588 = vld [vmem:[%s0 + $0x20] sm:$0xff]
        %v589 = vld [vmem:[%s0 + $0x28] sm:$0xff]
        %v590 = vld [vmem:[%s0 + $0x30] sm:$0xff]
        %v591 = vld [vmem:[%s0 + $0x38] sm:$0xff]
        %v592 = vld [vmem:[%s0 + $0x40] sm:$0xff]
        %v593 = vld [vmem:[%s0 + $0x48] sm:$0xff]
        %v594 = vld [vmem:[%s0 + $0x50] sm:$0xff]
        %v595 = vld [vmem:[%s0 + $0x58] sm:$0xff]
        %v596 = vld [vmem:[%s0 + $0x60] sm:$0xff]
        %v597 = vld [vmem:[%s0 + $0x68] sm:$0xff]
        %v598 = vld [vmem:[%s0 + $0x70] sm:$0xff]
        %v599 = vld [vmem:[%s0 + $0x78] sm:$0xff]
        %v600 = vld [vmem:[%s4] sm:$0x1]
        %v602 = vlaneseq
        %v603 = vshrl.u32 %v602, 7
        %v604 = vsub.s32 0, %v603
        %v605 = vrot.slane %v600, %v604
        %v607 = vmul.f32 %v584, %v605
        %v608 = vmul.f32 %v585, %v605
        %v609 = vmul.f32 %v586, %v605
        %v610 = vmul.f32 %v587, %v605
        %v611 = vmul.f32 %v588, %v605
        %v612 = vmul.f32 %v589, %v605
        %v613 = vmul.f32 %v590, %v605
        %v614 = vmul.f32 %v591, %v605
        %v615 = vmul.f32 %v592, %v605
        %v616 = vmul.f32 %v593, %v605
        %v617 = vmul.f32 %v594, %v605
        %v618 = vmul.f32 %v595, %v605
        %v619 = vmul.f32 %v596, %v605
        %v620 = vmul.f32 %v597, %v605
        %v621 = vmul.f32 %v598, %v605
        %v622 = vmul.f32 %v599, %v605
        %v623 = vld [vmem:[%s5] sm:$0x1]
        %v625 = vlaneseq
        %v626 = vshrl.u32 %v625, 7
        %v627 = vsub.s32 0, %v626
        %v628 = vrot.slane %v623, %v627
        %v630 = vadd.f32 %v607, %v628
        %v631 = vadd.f32 %v608, %v628
        %v632 = vadd.f32 %v609, %v628
        %v633 = vadd.f32 %v610, %v628
        %v634 = vadd.f32 %v611, %v628
        %v635 = vadd.f32 %v612, %v628
        %v636 = vadd.f32 %v613, %v628
        %v637 = vadd.f32 %v614, %v628
        %v638 = vadd.f32 %v615, %v628
        %v639 = vadd.f32 %v616, %v628
        %v640 = vadd.f32 %v617, %v628
        %v641 = vadd.f32 %v618, %v628
        %v642 = vadd.f32 %v619, %v628
        %v643 = vadd.f32 %v620, %v628
        %v644 = vadd.f32 %v621, %v628
        %v645 = vadd.f32 %v622, %v628
        %646 = vst [vmem:[#allocation2] sm:$0xff] %v630
        %647 = vst [vmem:[#allocation2 + $0x8] sm:$0xff] %v631
        %648 = vst [vmem:[#allocation2 + $0x10] sm:$0xff] %v632
        %649 = vst [vmem:[#allocation2 + $0x18] sm:$0xff] %v633
        %650 = vst [vmem:[#allocation2 + $0x20] sm:$0xff] %v634
        %651 = vst [vmem:[#allocation2 + $0x28] sm:$0xff] %v635
        %652 = vst [vmem:[#allocation2 + $0x30] sm:$0xff] %v636
        %653 = vst [vmem:[#allocation2 + $0x38] sm:$0xff] %v637
        %654 = vst [vmem:[#allocation2 + $0x40] sm:$0xff] %v638
        %655 = vst [vmem:[#allocation2 + $0x48] sm:$0xff] %v639
        %656 = vst [vmem:[#allocation2 + $0x50] sm:$0xff] %v640
        %657 = vst [vmem:[#allocation2 + $0x58] sm:$0xff] %v641
        %658 = vst [vmem:[#allocation2 + $0x60] sm:$0xff] %v642
        %659 = vst [vmem:[#allocation2 + $0x68] sm:$0xff] %v643
        %660 = vst [vmem:[#allocation2 + $0x70] sm:$0xff] %v644
        %661 = vst [vmem:[#allocation2 + $0x78] sm:$0xff] %v645
      $region76: #{gine_forward.1} parent=71 // pred_fallthru
        _
      // Predicated region
      $region77: #{gine_forward.1} parent=71 // pred_check
        %p662 = pneg %p579
      $region78: #{gine_forward.1} parent=71 // pred_check_branch
        %664 = sbr.rel (%p662) target = $region80
      $region79: #{gine_forward.1} parent=71 // pred_region
        %665 = vst [vmem:[#allocation3] sm:$0xff] 0.0
        %666 = vst [vmem:[#allocation3 + $0x8] sm:$0xff] 0.0
        %667 = vst [vmem:[#allocation3 + $0x10] sm:$0xff] 0.0
        %668 = vst [vmem:[#allocation3 + $0x18] sm:$0xff] 0.0
        %669 = vst [vmem:[#allocation3 + $0x20] sm:$0xff] 0.0
        %670 = vst [vmem:[#allocation3 + $0x28] sm:$0xff] 0.0
        %671 = vst [vmem:[#allocation3 + $0x30] sm:$0xff] 0.0
        %672 = vst [vmem:[#allocation3 + $0x38] sm:$0xff] 0.0
        %673 = vst [vmem:[#allocation3 + $0x40] sm:$0xff] 0.0
        %674 = vst [vmem:[#allocation3 + $0x48] sm:$0xff] 0.0
        %675 = vst [vmem:[#allocation3 + $0x50] sm:$0xff] 0.0
        %676 = vst [vmem:[#allocation3 + $0x58] sm:$0xff] 0.0
        %677 = vst [vmem:[#allocation3 + $0x60] sm:$0xff] 0.0
        %678 = vst [vmem:[#allocation3 + $0x68] sm:$0xff] 0.0
        %679 = vst [vmem:[#allocation3 + $0x70] sm:$0xff] 0.0
        %680 = vst [vmem:[#allocation3 + $0x78] sm:$0xff] 0.0
      $region80: #{gine_forward.1} parent=71 // pred_fallthru
        _
      %v681 = vld [vmem:[#allocation2] sm:$0xff]
      %v682 = vld [vmem:[#allocation2 + $0x8] sm:$0xff]
      %v683 = vld [vmem:[#allocation2 + $0x10] sm:$0xff]
      %v684 = vld [vmem:[#allocation2 + $0x18] sm:$0xff]
      %v685 = vld [vmem:[#allocation2 + $0x20] sm:$0xff]
      %v686 = vld [vmem:[#allocation2 + $0x28] sm:$0xff]
      %v687 = vld [vmem:[#allocation2 + $0x30] sm:$0xff]
      %v688 = vld [vmem:[#allocation2 + $0x38] sm:$0xff]
      %v689 = vld [vmem:[#allocation2 + $0x40] sm:$0xff]
      %v690 = vld [vmem:[#allocation2 + $0x48] sm:$0xff]
      %v691 = vld [vmem:[#allocation2 + $0x50] sm:$0xff]
      %v692 = vld [vmem:[#allocation2 + $0x58] sm:$0xff]
      %v693 = vld [vmem:[#allocation2 + $0x60] sm:$0xff]
      %v694 = vld [vmem:[#allocation2 + $0x68] sm:$0xff]
      %v695 = vld [vmem:[#allocation2 + $0x70] sm:$0xff]
      %v696 = vld [vmem:[#allocation2 + $0x78] sm:$0xff]
      %v697 = vld [vmem:[%s548] sm:$0xff]
      %v698 = vld [vmem:[%s548 + $0x8] sm:$0xff]
      %v699 = vld [vmem:[%s548 + $0x10] sm:$0xff]
      %v700 = vld [vmem:[%s548 + $0x18] sm:$0xff]
      %v701 = vld [vmem:[%s548 + $0x20] sm:$0xff]
      %v702 = vld [vmem:[%s548 + $0x28] sm:$0xff]
      %v703 = vld [vmem:[%s548 + $0x30] sm:$0xff]
      %v704 = vld [vmem:[%s548 + $0x38] sm:$0xff]
      %v705 = vld [vmem:[%s548 + $0x40] sm:$0xff]
      %v706 = vld [vmem:[%s548 + $0x48] sm:$0xff]
      %v707 = vld [vmem:[%s548 + $0x50] sm:$0xff]
      %v708 = vld [vmem:[%s548 + $0x58] sm:$0xff]
      %v709 = vld [vmem:[%s548 + $0x60] sm:$0xff]
      %v710 = vld [vmem:[%s548 + $0x68] sm:$0xff]
      %v711 = vld [vmem:[%s548 + $0x70] sm:$0xff]
      %v712 = vld [vmem:[%s548 + $0x78] sm:$0xff]
      %v713 = vld [vmem:[%s548 + $0x80] sm:$0xff]
      %v714 = vld [vmem:[%s548 + $0x88] sm:$0xff]
      %v715 = vld [vmem:[%s548 + $0x90] sm:$0xff]
      %v716 = vld [vmem:[%s548 + $0x98] sm:$0xff]
      %v717 = vld [vmem:[%s548 + $0xa0] sm:$0xff]
      %v718 = vld [vmem:[%s548 + $0xa8] sm:$0xff]
      %v719 = vld [vmem:[%s548 + $0xb0] sm:$0xff]
      %v720 = vld [vmem:[%s548 + $0xb8] sm:$0xff]
      %v721 = vld [vmem:[%s548 + $0xc0] sm:$0xff]
      %v722 = vld [vmem:[%s548 + $0xc8] sm:$0xff]
      %v723 = vld [vmem:[%s548 + $0xd0] sm:$0xff]
      %v724 = vld [vmem:[%s548 + $0xd8] sm:$0xff]
      %v725 = vld [vmem:[%s548 + $0xe0] sm:$0xff]
      %v726 = vld [vmem:[%s548 + $0xe8] sm:$0xff]
      %v727 = vld [vmem:[%s548 + $0xf0] sm:$0xff]
      %v728 = vld [vmem:[%s548 + $0xf8] sm:$0xff]
      %v729 = vlaneseq
      %v730 = vand.u32 %v729, 127
      %731 = vset.pattern.permute.xlu0 0
      %732 = vperm.xlu0 %731, %v697
      %v733 = vpop.permute.xlu0 %732
      %734 = vset.pattern.permute.xlu0 0
      %735 = vperm.xlu0 %734, %v698
      %v736 = vpop.permute.xlu0 %735
      %737 = vset.pattern.permute.xlu0 0
      %738 = vperm.xlu0 %737, %v699
      %v739 = vpop.permute.xlu0 %738
      %740 = vset.pattern.permute.xlu0 0
      %741 = vperm.xlu0 %740, %v700
      %v742 = vpop.permute.xlu0 %741
      %743 = vset.pattern.permute.xlu0 0
      %744 = vperm.xlu0 %743, %v701
      %v745 = vpop.permute.xlu0 %744
      %746 = vset.pattern.permute.xlu0 0
      %747 = vperm.xlu0 %746, %v702
      %v748 = vpop.permute.xlu0 %747
      %749 = vset.pattern.permute.xlu0 0
      %750 = vperm.xlu0 %749, %v703
      %v751 = vpop.permute.xlu0 %750
      %752 = vset.pattern.permute.xlu0 0
      %753 = vperm.xlu0 %752, %v704
      %v754 = vpop.permute.xlu0 %753
      %755 = vset.pattern.permute.xlu0 0
      %756 = vperm.xlu0 %755, %v705
      %v757 = vpop.permute.xlu0 %756
      %758 = vset.pattern.permute.xlu0 0
      %759 = vperm.xlu0 %758, %v706
      %v760 = vpop.permute.xlu0 %759
      %761 = vset.pattern.permute.xlu0 0
      %762 = vperm.xlu0 %761, %v707
      %v763 = vpop.permute.xlu0 %762
      %764 = vset.pattern.permute.xlu0 0
      %765 = vperm.xlu0 %764, %v708
      %v766 = vpop.permute.xlu0 %765
      %767 = vset.pattern.permute.xlu0 0
      %768 = vperm.xlu0 %767, %v709
      %v769 = vpop.permute.xlu0 %768
      %770 = vset.pattern.permute.xlu0 0
      %771 = vperm.xlu0 %770, %v710
      %v772 = vpop.permute.xlu0 %771
      %773 = vset.pattern.permute.xlu0 0
      %774 = vperm.xlu0 %773, %v711
      %v775 = vpop.permute.xlu0 %774
      %776 = vset.pattern.permute.xlu0 0
      %777 = vperm.xlu0 %776, %v712
      %v778 = vpop.permute.xlu0 %777
      %779 = vset.pattern.permute.xlu0 0
      %780 = vperm.xlu0 %779, %v713
      %v781 = vpop.permute.xlu0 %780
      %782 = vset.pattern.permute.xlu0 0
      %783 = vperm.xlu0 %782, %v714
      %v784 = vpop.permute.xlu0 %783
      %785 = vset.pattern.permute.xlu0 0
      %786 = vperm.xlu0 %785, %v715
      %v787 = vpop.permute.xlu0 %786
      %788 = vset.pattern.permute.xlu0 0
      %789 = vperm.xlu0 %788, %v716
      %v790 = vpop.permute.xlu0 %789
      %791 = vset.pattern.permute.xlu0 0
      %792 = vperm.xlu0 %791, %v717
      %v793 = vpop.permute.xlu0 %792
      %794 = vset.pattern.permute.xlu0 0
      %795 = vperm.xlu0 %794, %v718
      %v796 = vpop.permute.xlu0 %795
      %797 = vset.pattern.permute.xlu0 0
      %798 = vperm.xlu0 %797, %v719
      %v799 = vpop.permute.xlu0 %798
      %800 = vset.pattern.permute.xlu0 0
      %801 = vperm.xlu0 %800, %v720
      %v802 = vpop.permute.xlu0 %801
      %803 = vset.pattern.permute.xlu0 0
      %804 = vperm.xlu0 %803, %v721
      %v805 = vpop.permute.xlu0 %804
      %806 = vset.pattern.permute.xlu0 0
      %807 = vperm.xlu0 %806, %v722
      %v808 = vpop.permute.xlu0 %807
      %809 = vset.pattern.permute.xlu0 0
      %810 = vperm.xlu0 %809, %v723
      %v811 = vpop.permute.xlu0 %810
      %812 = vset.pattern.permute.xlu0 0
      %813 = vperm.xlu0 %812, %v724
      %v814 = vpop.permute.xlu0 %813
      %815 = vset.pattern.permute.xlu0 0
      %816 = vperm.xlu0 %815, %v725
      %v817 = vpop.permute.xlu0 %816
      %818 = vset.pattern.permute.xlu0 0
      %819 = vperm.xlu0 %818, %v726
      %v820 = vpop.permute.xlu0 %819
      %821 = vset.pattern.permute.xlu0 0
      %822 = vperm.xlu0 %821, %v727
      %v823 = vpop.permute.xlu0 %822
      %824 = vset.pattern.permute.xlu0 0
      %825 = vperm.xlu0 %824, %v728
      %v826 = vpop.permute.xlu0 %825
      %vm827 = vcmp.eq.s32.totalorder %v733, %v730
      %vm828 = vcmp.eq.s32.totalorder %v736, %v730
      %vm829 = vcmp.eq.s32.totalorder %v739, %v730
      %vm830 = vcmp.eq.s32.totalorder %v742, %v730
      %vm831 = vcmp.eq.s32.totalorder %v745, %v730
      %vm832 = vcmp.eq.s32.totalorder %v748, %v730
      %vm833 = vcmp.eq.s32.totalorder %v751, %v730
      %vm834 = vcmp.eq.s32.totalorder %v754, %v730
      %vm835 = vcmp.eq.s32.totalorder %v757, %v730
      %vm836 = vcmp.eq.s32.totalorder %v760, %v730
      %vm837 = vcmp.eq.s32.totalorder %v763, %v730
      %vm838 = vcmp.eq.s32.totalorder %v766, %v730
      %vm839 = vcmp.eq.s32.totalorder %v769, %v730
      %vm840 = vcmp.eq.s32.totalorder %v772, %v730
      %vm841 = vcmp.eq.s32.totalorder %v775, %v730
      %vm842 = vcmp.eq.s32.totalorder %v778, %v730
      %vm843 = vcmp.eq.s32.totalorder %v781, %v730
      %vm844 = vcmp.eq.s32.totalorder %v784, %v730
      %vm845 = vcmp.eq.s32.totalorder %v787, %v730
      %vm846 = vcmp.eq.s32.totalorder %v790, %v730
      %vm847 = vcmp.eq.s32.totalorder %v793, %v730
      %vm848 = vcmp.eq.s32.totalorder %v796, %v730
      %vm849 = vcmp.eq.s32.totalorder %v799, %v730
      %vm850 = vcmp.eq.s32.totalorder %v802, %v730
      %vm851 = vcmp.eq.s32.totalorder %v805, %v730
      %vm852 = vcmp.eq.s32.totalorder %v808, %v730
      %vm853 = vcmp.eq.s32.totalorder %v811, %v730
      %vm854 = vcmp.eq.s32.totalorder %v814, %v730
      %vm855 = vcmp.eq.s32.totalorder %v817, %v730
      %vm856 = vcmp.eq.s32.totalorder %v820, %v730
      %vm857 = vcmp.eq.s32.totalorder %v823, %v730
      %vm858 = vcmp.eq.s32.totalorder %v826, %v730
      %v859 = vsel %vm827, 1.0, 0.0
      %v860 = vsel %vm828, 1.0, 0.0
      %v861 = vsel %vm829, 1.0, 0.0
      %v862 = vsel %vm830, 1.0, 0.0
      %v863 = vsel %vm831, 1.0, 0.0
      %v864 = vsel %vm832, 1.0, 0.0
      %v865 = vsel %vm833, 1.0, 0.0
      %v866 = vsel %vm834, 1.0, 0.0
      %v867 = vsel %vm835, 1.0, 0.0
      %v868 = vsel %vm836, 1.0, 0.0
      %v869 = vsel %vm837, 1.0, 0.0
      %v870 = vsel %vm838, 1.0, 0.0
      %v871 = vsel %vm839, 1.0, 0.0
      %v872 = vsel %vm840, 1.0, 0.0
      %v873 = vsel %vm841, 1.0, 0.0
      %v874 = vsel %vm842, 1.0, 0.0
      %v875 = vsel %vm843, 1.0, 0.0
      %v876 = vsel %vm844, 1.0, 0.0
      %v877 = vsel %vm845, 1.0, 0.0
      %v878 = vsel %vm846, 1.0, 0.0
      %v879 = vsel %vm847, 1.0, 0.0
      %v880 = vsel %vm848, 1.0, 0.0
      %v881 = vsel %vm849, 1.0, 0.0
      %v882 = vsel %vm850, 1.0, 0.0
      %v883 = vsel %vm851, 1.0, 0.0
      %v884 = vsel %vm852, 1.0, 0.0
      %v885 = vsel %vm853, 1.0, 0.0
      %v886 = vsel %vm854, 1.0, 0.0
      %v887 = vsel %vm855, 1.0, 0.0
      %v888 = vsel %vm856, 1.0, 0.0
      %v889 = vsel %vm857, 1.0, 0.0
      %v890 = vsel %vm858, 1.0, 0.0
      %v891 = vpack.c.bf16 %v860, %v859
      %v892 = vpack.c.bf16 %v862, %v861
      %v893 = vpack.c.bf16 %v864, %v863
      %v894 = vpack.c.bf16 %v866, %v865
      %v895 = vpack.c.bf16 %v868, %v867
      %v896 = vpack.c.bf16 %v870, %v869
      %v897 = vpack.c.bf16 %v872, %v871
      %v898 = vpack.c.bf16 %v874, %v873
      %v899 = vpack.c.bf16 %v876, %v875
      %v900 = vpack.c.bf16 %v878, %v877
      %v901 = vpack.c.bf16 %v880, %v879
      %v902 = vpack.c.bf16 %v882, %v881
      %v903 = vpack.c.bf16 %v884, %v883
      %v904 = vpack.c.bf16 %v886, %v885
      %v905 = vpack.c.bf16 %v888, %v887
      %v906 = vpack.c.bf16 %v890, %v889
      %v907 = vpack.c.bf16 %v682, %v681
      %v908 = vpack.c.bf16 %v684, %v683
      %v909 = vpack.c.bf16 %v686, %v685
      %v910 = vpack.c.bf16 %v688, %v687
      %v911 = vpack.c.bf16 %v690, %v689
      %v912 = vpack.c.bf16 %v692, %v691
      %v913 = vpack.c.bf16 %v694, %v693
      %v914 = vpack.c.bf16 %v696, %v695
      %v915 = vld [vmem:[%s542] sm:$0xf]
      %v916 = vld [vmem:[%s542 + $0x4] sm:$0xf]
      %v917 = vld [vmem:[%s542 + $0x8] sm:$0xf]
      %v918 = vld [vmem:[%s542 + $0xc] sm:$0xf]
      %v919 = vld [vmem:[%s542 + $0x10] sm:$0xf]
      %v920 = vld [vmem:[%s542 + $0x14] sm:$0xf]
      %v921 = vld [vmem:[%s542 + $0x18] sm:$0xf]
      %v922 = vld [vmem:[%s542 + $0x1c] sm:$0xf]
      %v923 = vld [vmem:[%s542 + $0x20] sm:$0xf]
      %v924 = vld [vmem:[%s542 + $0x24] sm:$0xf]
      %v925 = vld [vmem:[%s542 + $0x28] sm:$0xf]
      %v926 = vld [vmem:[%s542 + $0x2c] sm:$0xf]
      %v927 = vld [vmem:[%s542 + $0x30] sm:$0xf]
      %v928 = vld [vmem:[%s542 + $0x34] sm:$0xf]
      %v929 = vld [vmem:[%s542 + $0x38] sm:$0xf]
      %v930 = vld [vmem:[%s542 + $0x3c] sm:$0xf]
      %v931 = vld [vmem:[%s542 + $0x40] sm:$0xf]
      %v932 = vld [vmem:[%s542 + $0x44] sm:$0xf]
      %v933 = vld [vmem:[%s542 + $0x48] sm:$0xf]
      %v934 = vld [vmem:[%s542 + $0x4c] sm:$0xf]
      %v935 = vld [vmem:[%s542 + $0x50] sm:$0xf]
      %v936 = vld [vmem:[%s542 + $0x54] sm:$0xf]
      %v937 = vld [vmem:[%s542 + $0x58] sm:$0xf]
      %v938 = vld [vmem:[%s542 + $0x5c] sm:$0xf]
      %v939 = vld [vmem:[%s542 + $0x60] sm:$0xf]
      %v940 = vld [vmem:[%s542 + $0x64] sm:$0xf]
      %v941 = vld [vmem:[%s542 + $0x68] sm:$0xf]
      %v942 = vld [vmem:[%s542 + $0x6c] sm:$0xf]
      %v943 = vld [vmem:[%s542 + $0x70] sm:$0xf]
      %v944 = vld [vmem:[%s542 + $0x74] sm:$0xf]
      %v945 = vld [vmem:[%s542 + $0x78] sm:$0xf]
      %v946 = vld [vmem:[%s542 + $0x7c] sm:$0xf]
      %v947 = vld [vmem:[%s559] sm:$0xf]
      %v948 = vld [vmem:[%s559 + $0x4] sm:$0xf]
      %v949 = vld [vmem:[%s559 + $0x8] sm:$0xf]
      %v950 = vld [vmem:[%s559 + $0xc] sm:$0xf]
      %v951 = vld [vmem:[%s559 + $0x10] sm:$0xf]
      %v952 = vld [vmem:[%s559 + $0x14] sm:$0xf]
      %v953 = vld [vmem:[%s559 + $0x18] sm:$0xf]
      %v954 = vld [vmem:[%s559 + $0x1c] sm:$0xf]
      %v955 = vld [vmem:[%s559 + $0x20] sm:$0xf]
      %v956 = vld [vmem:[%s559 + $0x24] sm:$0xf]
      %v957 = vld [vmem:[%s559 + $0x28] sm:$0xf]
      %v958 = vld [vmem:[%s559 + $0x2c] sm:$0xf]
      %v959 = vld [vmem:[%s559 + $0x30] sm:$0xf]
      %v960 = vld [vmem:[%s559 + $0x34] sm:$0xf]
      %v961 = vld [vmem:[%s559 + $0x38] sm:$0xf]
      %v962 = vld [vmem:[%s559 + $0x3c] sm:$0xf]
      %v963 = vld [vmem:[%s562] sm:$0x1]
      %v965 = vlaneseq
      %v966 = vshrl.u32 %v965, 7
      %v967 = vsub.s32 0, %v966
      %v968 = vrot.slane %v963, %v967
      %v1002 = vunpack.c.l.b16 %v915
      %v1003 = vunpack.c.l.b16 %v916
      %v1004 = vunpack.c.l.b16 %v917
      %v1005 = vunpack.c.l.b16 %v918
      %v1006 = vunpack.c.l.b16 %v919
      %v1007 = vunpack.c.l.b16 %v920
      %v1008 = vunpack.c.l.b16 %v921
      %v1009 = vunpack.c.l.b16 %v922
      %v1010 = vunpack.c.l.b16 %v923
      %v1011 = vunpack.c.l.b16 %v924
      %v1012 = vunpack.c.l.b16 %v925
      %v1013 = vunpack.c.l.b16 %v926
      %v1014 = vunpack.c.l.b16 %v927
      %v1015 = vunpack.c.l.b16 %v928
      %v1016 = vunpack.c.l.b16 %v929
      %v1017 = vunpack.c.l.b16 %v930
      %v1018 = vunpack.c.l.b16 %v931
      %v1019 = vunpack.c.l.b16 %v932
      %v1020 = vunpack.c.l.b16 %v933
      %v1021 = vunpack.c.l.b16 %v934
      %v1022 = vunpack.c.l.b16 %v935
      %v1023 = vunpack.c.l.b16 %v936
      %v1024 = vunpack.c.l.b16 %v937
      %v1025 = vunpack.c.l.b16 %v938
      %v1026 = vunpack.c.l.b16 %v939
      %v1027 = vunpack.c.l.b16 %v940
      %v1028 = vunpack.c.l.b16 %v941
      %v1029 = vunpack.c.l.b16 %v942
      %v1030 = vunpack.c.l.b16 %v943
      %v1031 = vunpack.c.l.b16 %v944
      %v1032 = vunpack.c.l.b16 %v945
      %v1033 = vunpack.c.l.b16 %v946
      %v1034 = vpack.c.b16 %v1003, %v1002
      %v1035 = vpack.c.b16 %v1005, %v1004
      %v1036 = vpack.c.b16 %v1007, %v1006
      %v1037 = vpack.c.b16 %v1009, %v1008
      %v1038 = vpack.c.b16 %v1011, %v1010
      %v1039 = vpack.c.b16 %v1013, %v1012
      %v1040 = vpack.c.b16 %v1015, %v1014
      %v1041 = vpack.c.b16 %v1017, %v1016
      %v1042 = vpack.c.b16 %v1019, %v1018
      %v1043 = vpack.c.b16 %v1021, %v1020
      %v1044 = vpack.c.b16 %v1023, %v1022
      %v1045 = vpack.c.b16 %v1025, %v1024
      %v1046 = vpack.c.b16 %v1027, %v1026
      %v1047 = vpack.c.b16 %v1029, %v1028
      %v1048 = vpack.c.b16 %v1031, %v1030
      %v1049 = vpack.c.b16 %v1033, %v1032
      %v1082 = vunpack.c.l.b16 %v947
      %v1083 = vunpack.c.l.b16 %v948
      %v1084 = vunpack.c.l.b16 %v949
      %v1085 = vunpack.c.l.b16 %v950
      %v1086 = vunpack.c.l.b16 %v951
      %v1087 = vunpack.c.l.b16 %v952
      %v1088 = vunpack.c.l.b16 %v953
      %v1089 = vunpack.c.l.b16 %v954
      %v1090 = vunpack.c.l.b16 %v955
      %v1091 = vunpack.c.l.b16 %v956
      %v1092 = vunpack.c.l.b16 %v957
      %v1093 = vunpack.c.l.b16 %v958
      %v1094 = vunpack.c.l.b16 %v959
      %v1095 = vunpack.c.l.b16 %v960
      %v1096 = vunpack.c.l.b16 %v961
      %v1097 = vunpack.c.l.b16 %v962
      %v1098 = vpack.c.b16 %v1083, %v1082
      %v1099 = vpack.c.b16 %v1085, %v1084
      %v1100 = vpack.c.b16 %v1087, %v1086
      %v1101 = vpack.c.b16 %v1089, %v1088
      %v1102 = vpack.c.b16 %v1091, %v1090
      %v1103 = vpack.c.b16 %v1093, %v1092
      %v1104 = vpack.c.b16 %v1095, %v1094
      %v1105 = vpack.c.b16 %v1097, %v1096
      %1114 = vmatprep.subr.bf16.mxu0 0
      %1115 = vmatpush1.bf16.msra.mxu0 %v1098
      %1116 = vmatprep.subr.bf16.mxu0 0
      %1117 = vmatpush1.bf16.msra.mxu0 %v1099
      %1118 = vmatprep.subr.bf16.mxu0 0
      %1119 = vmatpush1.bf16.msra.mxu0 %v1100
      %1120 = vmatprep.subr.bf16.mxu0 0
      %1121 = vmatpush1.bf16.msra.mxu0 %v1101
      %1122 = vmatprep.subr.bf16.mxu0 0
      %1123 = vmatpush1.bf16.msra.mxu0 %v1102
      %1124 = vmatprep.subr.bf16.mxu0 0
      %1125 = vmatpush1.bf16.msra.mxu0 %v1103
      %1126 = vmatprep.subr.bf16.mxu0 0
      %1127 = vmatpush1.bf16.msra.mxu0 %v1104
      %1128 = vmatprep.subr.bf16.mxu0 0
      %1129 = vmatpush1.bf16.msra.mxu0 %v1105
      %1130 = vmatprep.subr.bf16.mxu0 0
      %1131 = vmatpush1.bf16.msra.mxu0 0
      %1132 = vmatprep.subr.bf16.mxu0 0
      %1133 = vmatpush1.bf16.msra.mxu0 0
      %1134 = vmatprep.subr.bf16.mxu0 0
      %1135 = vmatpush1.bf16.msra.mxu0 0
      %1136 = vmatprep.subr.bf16.mxu0 0
      %1137 = vmatpush1.bf16.msra.mxu0 0
      %1138 = vmatprep.subr.bf16.mxu0 0
      %1139 = vmatpush1.bf16.msra.mxu0 0
      %1140 = vmatprep.subr.bf16.mxu0 0
      %1141 = vmatpush1.bf16.msra.mxu0 0
      %1142 = vmatprep.subr.bf16.mxu0 0
      %1143 = vmatpush1.bf16.msra.mxu0 0
      %1144 = vmatprep.subr.bf16.mxu0 0
      %1145 = vmatpush1.bf16.msra.mxu0 0
      %1146 = vmatprep.mubr.bf16.mxu0 0
      %1147 = vmatmul.mubr.bf16.gmra.mrb[0].mxu0 %v1034
      %v1148 = vpop.f32.mrb[0].mxu0
      %v1149 = vadd.f32 %v968, %v1148
      %v1150 = vpop.f32.mrb[0].mxu0
      %v1151 = vpop.f32.mrb[0].mxu0
      %v1152 = vadd.f32 %v968, %v1151
      %v1153 = vpop.f32.mrb[0].mxu0
      %1154 = vmatprep.mubr.bf16.mxu0 0
      %1155 = vmatmul.mubr.bf16.gmra.mrb[0].mxu0 %v1035
      %v1156 = vpop.f32.mrb[0].mxu0
      %v1157 = vadd.f32 %v968, %v1156
      %v1158 = vpop.f32.mrb[0].mxu0
      %v1159 = vpop.f32.mrb[0].mxu0
      %v1160 = vadd.f32 %v968, %v1159
      %v1161 = vpop.f32.mrb[0].mxu0
      %1162 = vmatprep.mubr.bf16.mxu0 0
      %1163 = vmatmul.mubr.bf16.gmra.mrb[0].mxu0 %v1036
      %v1164 = vpop.f32.mrb[0].mxu0
      %v1165 = vadd.f32 %v968, %v1164
      %v1166 = vpop.f32.mrb[0].mxu0
      %v1167 = vpop.f32.mrb[0].mxu0
      %v1168 = vadd.f32 %v968, %v1167
      %v1169 = vpop.f32.mrb[0].mxu0
      %1170 = vmatprep.mubr.bf16.mxu0 0
      %1171 = vmatmul.mubr.bf16.gmra.mrb[0].mxu0 %v1037
      %v1172 = vpop.f32.mrb[0].mxu0
      %v1173 = vadd.f32 %v968, %v1172
      %v1174 = vpop.f32.mrb[0].mxu0
      %v1175 = vpop.f32.mrb[0].mxu0
      %v1176 = vadd.f32 %v968, %v1175
      %v1177 = vpop.f32.mrb[0].mxu0
      %1178 = vmatprep.mubr.bf16.mxu0 0
      %1179 = vmatmul.mubr.bf16.gmra.mrb[0].mxu0 %v1038
      %v1180 = vpop.f32.mrb[0].mxu0
      %v1181 = vadd.f32 %v968, %v1180
      %v1182 = vpop.f32.mrb[0].mxu0
      %v1183 = vpop.f32.mrb[0].mxu0
      %v1184 = vadd.f32 %v968, %v1183
      %v1185 = vpop.f32.mrb[0].mxu0
      %1186 = vmatprep.mubr.bf16.mxu0 0
      %1187 = vmatmul.mubr.bf16.gmra.mrb[0].mxu0 %v1039
      %v1188 = vpop.f32.mrb[0].mxu0
      %v1189 = vadd.f32 %v968, %v1188
      %v1190 = vpop.f32.mrb[0].mxu0
      %v1191 = vpop.f32.mrb[0].mxu0
      %v1192 = vadd.f32 %v968, %v1191
      %v1193 = vpop.f32.mrb[0].mxu0
      %1194 = vmatprep.mubr.bf16.mxu0 0
      %1195 = vmatmul.mubr.bf16.gmra.mrb[0].mxu0 %v1040
      %v1196 = vpop.f32.mrb[0].mxu0
      %v1197 = vadd.f32 %v968, %v1196
      %v1198 = vpop.f32.mrb[0].mxu0
      %v1199 = vpop.f32.mrb[0].mxu0
      %v1200 = vadd.f32 %v968, %v1199
      %v1201 = vpop.f32.mrb[0].mxu0
      %1202 = vmatprep.mubr.bf16.mxu0 0
      %1203 = vmatmul.mubr.bf16.gmra.mrb[0].mxu0 %v1041
      %v1204 = vpop.f32.mrb[0].mxu0
      %v1205 = vadd.f32 %v968, %v1204
      %v1206 = vpop.f32.mrb[0].mxu0
      %v1207 = vpop.f32.mrb[0].mxu0
      %v1208 = vadd.f32 %v968, %v1207
      %v1209 = vpop.f32.mrb[0].mxu0
      %1210 = vmatprep.mubr.bf16.mxu0 0
      %1211 = vmatmul.mubr.bf16.gmra.mrb[0].mxu0 %v1042
      %v1212 = vpop.f32.mrb[0].mxu0
      %v1213 = vadd.f32 %v968, %v1212
      %v1214 = vpop.f32.mrb[0].mxu0
      %v1215 = vpop.f32.mrb[0].mxu0
      %v1216 = vadd.f32 %v968, %v1215
      %v1217 = vpop.f32.mrb[0].mxu0
      %1218 = vmatprep.mubr.bf16.mxu0 0
      %1219 = vmatmul.mubr.bf16.gmra.mrb[0].mxu0 %v1043
      %v1220 = vpop.f32.mrb[0].mxu0
      %v1221 = vadd.f32 %v968, %v1220
      %v1222 = vpop.f32.mrb[0].mxu0
      %v1223 = vpop.f32.mrb[0].mxu0
      %v1224 = vadd.f32 %v968, %v1223
      %v1225 = vpop.f32.mrb[0].mxu0
      %1226 = vmatprep.mubr.bf16.mxu0 0
      %1227 = vmatmul.mubr.bf16.gmra.mrb[0].mxu0 %v1044
      %v1228 = vpop.f32.mrb[0].mxu0
      %v1229 = vadd.f32 %v968, %v1228
      %v1230 = vpop.f32.mrb[0].mxu0
      %v1231 = vpop.f32.mrb[0].mxu0
      %v1232 = vadd.f32 %v968, %v1231
      %v1233 = vpop.f32.mrb[0].mxu0
      %1234 = vmatprep.mubr.bf16.mxu0 0
      %1235 = vmatmul.mubr.bf16.gmra.mrb[0].mxu0 %v1045
      %v1236 = vpop.f32.mrb[0].mxu0
      %v1237 = vadd.f32 %v968, %v1236
      %v1238 = vpop.f32.mrb[0].mxu0
      %v1239 = vpop.f32.mrb[0].mxu0
      %v1240 = vadd.f32 %v968, %v1239
      %v1241 = vpop.f32.mrb[0].mxu0
      %1242 = vmatprep.mubr.bf16.mxu0 0
      %1243 = vmatmul.mubr.bf16.gmra.mrb[0].mxu0 %v1046
      %v1244 = vpop.f32.mrb[0].mxu0
      %v1245 = vadd.f32 %v968, %v1244
      %v1246 = vpop.f32.mrb[0].mxu0
      %v1247 = vpop.f32.mrb[0].mxu0
      %v1248 = vadd.f32 %v968, %v1247
      %v1249 = vpop.f32.mrb[0].mxu0
      %1250 = vmatprep.mubr.bf16.mxu0 0
      %1251 = vmatmul.mubr.bf16.gmra.mrb[0].mxu0 %v1047
      %v1252 = vpop.f32.mrb[0].mxu0
      %v1253 = vadd.f32 %v968, %v1252
      %v1254 = vpop.f32.mrb[0].mxu0
      %v1255 = vpop.f32.mrb[0].mxu0
      %v1256 = vadd.f32 %v968, %v1255
      %v1257 = vpop.f32.mrb[0].mxu0
      %1258 = vmatprep.mubr.bf16.mxu0 0
      %1259 = vmatmul.mubr.bf16.gmra.mrb[0].mxu0 %v1048
      %v1260 = vpop.f32.mrb[0].mxu0
      %v1261 = vadd.f32 %v968, %v1260
      %v1262 = vpop.f32.mrb[0].mxu0
      %v1263 = vpop.f32.mrb[0].mxu0
      %v1264 = vadd.f32 %v968, %v1263
      %v1265 = vpop.f32.mrb[0].mxu0
      %1266 = vmatprep.mubr.bf16.mxu0 0
      %1267 = vmatmul.mubr.bf16.gmra.mrb[0].mxu0 %v1049
      %v1268 = vpop.f32.mrb[0].mxu0
      %v1269 = vadd.f32 %v968, %v1268
      %v1270 = vpop.f32.mrb[0].mxu0
      %v1271 = vpop.f32.mrb[0].mxu0
      %v1272 = vadd.f32 %v968, %v1271
      %v1273 = vpop.f32.mrb[0].mxu0
      %1274 = vdwg.mxu0
      %1275 = vmatprep.subr.bf16.mxu0 0
      %1276 = vmatpush1.bf16.msra.mxu0 %v907
      %1277 = vmatprep.subr.bf16.mxu0 0
      %1278 = vmatpush1.bf16.msra.mxu0 %v908
      %1279 = vmatprep.subr.bf16.mxu0 0
      %1280 = vmatpush1.bf16.msra.mxu0 %v909
      %1281 = vmatprep.subr.bf16.mxu0 0
      %1282 = vmatpush1.bf16.msra.mxu0 %v910
      %1283 = vmatprep.subr.bf16.mxu0 0
      %1284 = vmatpush1.bf16.msra.mxu0 %v911
      %1285 = vmatprep.subr.bf16.mxu0 0
      %1286 = vmatpush1.bf16.msra.mxu0 %v912
      %1287 = vmatprep.subr.bf16.mxu0 0
      %1288 = vmatpush1.bf16.msra.mxu0 %v913
      %1289 = vmatprep.subr.bf16.mxu0 0
      %1290 = vmatpush1.bf16.msra.mxu0 %v914
      %1291 = vmatprep.subr.bf16.mxu0 0
      %1292 = vmatpush1.bf16.msra.mxu0 0
      %1293 = vmatprep.subr.bf16.mxu0 0
      %1294 = vmatpush1.bf16.msra.mxu0 0
      %1295 = vmatprep.subr.bf16.mxu0 0
      %1296 = vmatpush1.bf16.msra.mxu0 0
      %1297 = vmatprep.subr.bf16.mxu0 0
      %1298 = vmatpush1.bf16.msra.mxu0 0
      %1299 = vmatprep.subr.bf16.mxu0 0
      %1300 = vmatpush1.bf16.msra.mxu0 0
      %1301 = vmatprep.subr.bf16.mxu0 0
      %1302 = vmatpush1.bf16.msra.mxu0 0
      %1303 = vmatprep.subr.bf16.mxu0 0
      %1304 = vmatpush1.bf16.msra.mxu0 0
      %1305 = vmatprep.subr.bf16.mxu0 0
      %1306 = vmatpush1.bf16.msra.mxu0 0
      %1307 = vmatprep.mubr.bf16.mxu0 0
      %1308 = vmatmul.mubr.bf16.gmra.mrb[0].mxu0 %v891
      %v1309 = vpop.f32.mrb[0].mxu0
      %v1310 = vadd.f32 %v1149, %v1309
      %v1311 = vpop.f32.mrb[0].mxu0
      %v1312 = vpop.f32.mrb[0].mxu0
      %v1313 = vadd.f32 %v1152, %v1312
      %v1314 = vpop.f32.mrb[0].mxu0
      %1315 = vmatprep.mubr.bf16.mxu0 0
      %1316 = vmatmul.mubr.bf16.gmra.mrb[0].mxu0 %v892
      %v1317 = vpop.f32.mrb[0].mxu0
      %v1318 = vadd.f32 %v1157, %v1317
      %v1319 = vpop.f32.mrb[0].mxu0
      %v1320 = vpop.f32.mrb[0].mxu0
      %v1321 = vadd.f32 %v1160, %v1320
      %v1322 = vpop.f32.mrb[0].mxu0
      %1323 = vmatprep.mubr.bf16.mxu0 0
      %1324 = vmatmul.mubr.bf16.gmra.mrb[0].mxu0 %v893
      %v1325 = vpop.f32.mrb[0].mxu0
      %v1326 = vadd.f32 %v1165, %v1325
      %v1327 = vpop.f32.mrb[0].mxu0
      %v1328 = vpop.f32.mrb[0].mxu0
      %v1329 = vadd.f32 %v1168, %v1328
      %v1330 = vpop.f32.mrb[0].mxu0
      %1331 = vmatprep.mubr.bf16.mxu0 0
      %1332 = vmatmul.mubr.bf16.gmra.mrb[0].mxu0 %v894
      %v1333 = vpop.f32.mrb[0].mxu0
      %v1334 = vadd.f32 %v1173, %v1333
      %v1335 = vpop.f32.mrb[0].mxu0
      %v1336 = vpop.f32.mrb[0].mxu0
      %v1337 = vadd.f32 %v1176, %v1336
      %v1338 = vpop.f32.mrb[0].mxu0
      %1339 = vmatprep.mubr.bf16.mxu0 0
      %1340 = vmatmul.mubr.bf16.gmra.mrb[0].mxu0 %v895
      %v1341 = vpop.f32.mrb[0].mxu0
      %v1342 = vadd.f32 %v1181, %v1341
      %v1343 = vpop.f32.mrb[0].mxu0
      %v1344 = vpop.f32.mrb[0].mxu0
      %v1345 = vadd.f32 %v1184, %v1344
      %v1346 = vpop.f32.mrb[0].mxu0
      %1347 = vmatprep.mubr.bf16.mxu0 0
      %1348 = vmatmul.mubr.bf16.gmra.mrb[0].mxu0 %v896
      %v1349 = vpop.f32.mrb[0].mxu0
      %v1350 = vadd.f32 %v1189, %v1349
      %v1351 = vpop.f32.mrb[0].mxu0
      %v1352 = vpop.f32.mrb[0].mxu0
      %v1353 = vadd.f32 %v1192, %v1352
      %v1354 = vpop.f32.mrb[0].mxu0
      %1355 = vmatprep.mubr.bf16.mxu0 0
      %1356 = vmatmul.mubr.bf16.gmra.mrb[0].mxu0 %v897
      %v1357 = vpop.f32.mrb[0].mxu0
      %v1358 = vadd.f32 %v1197, %v1357
      %v1359 = vpop.f32.mrb[0].mxu0
      %v1360 = vpop.f32.mrb[0].mxu0
      %v1361 = vadd.f32 %v1200, %v1360
      %v1362 = vpop.f32.mrb[0].mxu0
      %1363 = vmatprep.mubr.bf16.mxu0 0
      %1364 = vmatmul.mubr.bf16.gmra.mrb[0].mxu0 %v898
      %v1365 = vpop.f32.mrb[0].mxu0
      %v1366 = vadd.f32 %v1205, %v1365
      %v1367 = vpop.f32.mrb[0].mxu0
      %v1368 = vpop.f32.mrb[0].mxu0
      %v1369 = vadd.f32 %v1208, %v1368
      %v1370 = vpop.f32.mrb[0].mxu0
      %1371 = vmatprep.mubr.bf16.mxu0 0
      %1372 = vmatmul.mubr.bf16.gmra.mrb[0].mxu0 %v899
      %v1373 = vpop.f32.mrb[0].mxu0
      %v1374 = vadd.f32 %v1213, %v1373
      %v1375 = vpop.f32.mrb[0].mxu0
      %v1376 = vpop.f32.mrb[0].mxu0
      %v1377 = vadd.f32 %v1216, %v1376
      %v1378 = vpop.f32.mrb[0].mxu0
      %1379 = vmatprep.mubr.bf16.mxu0 0
      %1380 = vmatmul.mubr.bf16.gmra.mrb[0].mxu0 %v900
      %v1381 = vpop.f32.mrb[0].mxu0
      %v1382 = vadd.f32 %v1221, %v1381
      %v1383 = vpop.f32.mrb[0].mxu0
      %v1384 = vpop.f32.mrb[0].mxu0
      %v1385 = vadd.f32 %v1224, %v1384
      %v1386 = vpop.f32.mrb[0].mxu0
      %1387 = vmatprep.mubr.bf16.mxu0 0
      %1388 = vmatmul.mubr.bf16.gmra.mrb[0].mxu0 %v901
      %v1389 = vpop.f32.mrb[0].mxu0
      %v1390 = vadd.f32 %v1229, %v1389
      %v1391 = vpop.f32.mrb[0].mxu0
      %v1392 = vpop.f32.mrb[0].mxu0
      %v1393 = vadd.f32 %v1232, %v1392
      %v1394 = vpop.f32.mrb[0].mxu0
      %1395 = vmatprep.mubr.bf16.mxu0 0
      %1396 = vmatmul.mubr.bf16.gmra.mrb[0].mxu0 %v902
      %v1397 = vpop.f32.mrb[0].mxu0
      %v1398 = vadd.f32 %v1237, %v1397
      %v1399 = vpop.f32.mrb[0].mxu0
      %v1400 = vpop.f32.mrb[0].mxu0
      %v1401 = vadd.f32 %v1240, %v1400
      %v1402 = vpop.f32.mrb[0].mxu0
      %1403 = vmatprep.mubr.bf16.mxu0 0
      %1404 = vmatmul.mubr.bf16.gmra.mrb[0].mxu0 %v903
      %v1405 = vpop.f32.mrb[0].mxu0
      %v1406 = vadd.f32 %v1245, %v1405
      %v1407 = vpop.f32.mrb[0].mxu0
      %v1408 = vpop.f32.mrb[0].mxu0
      %v1409 = vadd.f32 %v1248, %v1408
      %v1410 = vpop.f32.mrb[0].mxu0
      %1411 = vmatprep.mubr.bf16.mxu0 0
      %1412 = vmatmul.mubr.bf16.gmra.mrb[0].mxu0 %v904
      %v1413 = vpop.f32.mrb[0].mxu0
      %v1414 = vadd.f32 %v1253, %v1413
      %v1415 = vpop.f32.mrb[0].mxu0
      %v1416 = vpop.f32.mrb[0].mxu0
      %v1417 = vadd.f32 %v1256, %v1416
      %v1418 = vpop.f32.mrb[0].mxu0
      %1419 = vmatprep.mubr.bf16.mxu0 0
      %1420 = vmatmul.mubr.bf16.gmra.mrb[0].mxu0 %v905
      %v1421 = vpop.f32.mrb[0].mxu0
      %v1422 = vadd.f32 %v1261, %v1421
      %v1423 = vpop.f32.mrb[0].mxu0
      %v1424 = vpop.f32.mrb[0].mxu0
      %v1425 = vadd.f32 %v1264, %v1424
      %v1426 = vpop.f32.mrb[0].mxu0
      %1427 = vmatprep.mubr.bf16.mxu0 0
      %1428 = vmatmul.mubr.bf16.gmra.mrb[0].mxu0 %v906
      %v1429 = vpop.f32.mrb[0].mxu0
      %v1430 = vadd.f32 %v1269, %v1429
      %v1431 = vpop.f32.mrb[0].mxu0
      %v1432 = vpop.f32.mrb[0].mxu0
      %v1433 = vadd.f32 %v1272, %v1432
      %v1434 = vpop.f32.mrb[0].mxu0
      %1435 = vdwg.mxu0
      %v1436 = vmax.f32 %v1310, 0.0
      %v1437 = vmax.f32 %v1313, 0.0
      %v1438 = vmax.f32 %v1318, 0.0
      %v1439 = vmax.f32 %v1321, 0.0
      %v1440 = vmax.f32 %v1326, 0.0
      %v1441 = vmax.f32 %v1329, 0.0
      %v1442 = vmax.f32 %v1334, 0.0
      %v1443 = vmax.f32 %v1337, 0.0
      %v1444 = vmax.f32 %v1342, 0.0
      %v1445 = vmax.f32 %v1345, 0.0
      %v1446 = vmax.f32 %v1350, 0.0
      %v1447 = vmax.f32 %v1353, 0.0
      %v1448 = vmax.f32 %v1358, 0.0
      %v1449 = vmax.f32 %v1361, 0.0
      %v1450 = vmax.f32 %v1366, 0.0
      %v1451 = vmax.f32 %v1369, 0.0
      %v1452 = vmax.f32 %v1374, 0.0
      %v1453 = vmax.f32 %v1377, 0.0
      %v1454 = vmax.f32 %v1382, 0.0
      %v1455 = vmax.f32 %v1385, 0.0
      %v1456 = vmax.f32 %v1390, 0.0
      %v1457 = vmax.f32 %v1393, 0.0
      %v1458 = vmax.f32 %v1398, 0.0
      %v1459 = vmax.f32 %v1401, 0.0
      %v1460 = vmax.f32 %v1406, 0.0
      %v1461 = vmax.f32 %v1409, 0.0
      %v1462 = vmax.f32 %v1414, 0.0
      %v1463 = vmax.f32 %v1417, 0.0
      %v1464 = vmax.f32 %v1422, 0.0
      %v1465 = vmax.f32 %v1425, 0.0
      %v1466 = vmax.f32 %v1430, 0.0
      %v1467 = vmax.f32 %v1433, 0.0
      %v1468 = vlaneseq
      %v1469 = vshrl.u32 %v1468, 7
      %v1470 = vadd.s32 %v1469, 8
      %v1471 = vadd.s32 %v1469, 16
      %v1472 = vadd.s32 %v1469, 24
      %v1473 = vadd.s32 %v1469, 32
      %v1474 = vadd.s32 %v1469, 40
      %v1475 = vadd.s32 %v1469, 48
      %v1476 = vadd.s32 %v1469, 56
      %v1477 = vadd.s32 %v1469, 64
      %v1478 = vadd.s32 %v1469, 72
      %v1479 = vadd.s32 %v1469, 80
      %v1480 = vadd.s32 %v1469, 88
      %v1481 = vadd.s32 %v1469, 96
      %v1482 = vadd.s32 %v1469, 104
      %v1483 = vadd.s32 %v1469, 112
      %v1484 = vadd.s32 %v1469, 120
      %v1485 = vld [vmem:[%s553] sm:$0x3]
      %v1486 = vlaneseq
      %v1487 = vshrl.u32 %v1486, 7
      %v1488 = vsub.s32 0, %v1487
      %v1489 = vrot.slane %v1485, %v1488
      %v1490 = vlaneseq
      %v1491 = vshrl.u32 %v1490, 7
      %v1492 = vsub.s32 1, %v1491
      %v1493 = vrot.slane %v1485, %v1492
      %vm1494 = vcmp.eq.s32.totalorder %v1469, %v1489
      %vm1495 = vcmp.eq.s32.totalorder %v1469, %v1493
      %vm1496 = vcmp.eq.s32.totalorder %v1470, %v1489
      %vm1497 = vcmp.eq.s32.totalorder %v1470, %v1493
      %vm1498 = vcmp.eq.s32.totalorder %v1471, %v1489
      %vm1499 = vcmp.eq.s32.totalorder %v1471, %v1493
      %vm1500 = vcmp.eq.s32.totalorder %v1472, %v1489
      %vm1501 = vcmp.eq.s32.totalorder %v1472, %v1493
      %vm1502 = vcmp.eq.s32.totalorder %v1473, %v1489
      %vm1503 = vcmp.eq.s32.totalorder %v1473, %v1493
      %vm1504 = vcmp.eq.s32.totalorder %v1474, %v1489
      %vm1505 = vcmp.eq.s32.totalorder %v1474, %v1493
      %vm1506 = vcmp.eq.s32.totalorder %v1475, %v1489
      %vm1507 = vcmp.eq.s32.totalorder %v1475, %v1493
      %vm1508 = vcmp.eq.s32.totalorder %v1476, %v1489
      %vm1509 = vcmp.eq.s32.totalorder %v1476, %v1493
      %vm1510 = vcmp.eq.s32.totalorder %v1477, %v1489
      %vm1511 = vcmp.eq.s32.totalorder %v1477, %v1493
      %vm1512 = vcmp.eq.s32.totalorder %v1478, %v1489
      %vm1513 = vcmp.eq.s32.totalorder %v1478, %v1493
      %vm1514 = vcmp.eq.s32.totalorder %v1479, %v1489
      %vm1515 = vcmp.eq.s32.totalorder %v1479, %v1493
      %vm1516 = vcmp.eq.s32.totalorder %v1480, %v1489
      %vm1517 = vcmp.eq.s32.totalorder %v1480, %v1493
      %vm1518 = vcmp.eq.s32.totalorder %v1481, %v1489
      %vm1519 = vcmp.eq.s32.totalorder %v1481, %v1493
      %vm1520 = vcmp.eq.s32.totalorder %v1482, %v1489
      %vm1521 = vcmp.eq.s32.totalorder %v1482, %v1493
      %vm1522 = vcmp.eq.s32.totalorder %v1483, %v1489
      %vm1523 = vcmp.eq.s32.totalorder %v1483, %v1493
      %vm1524 = vcmp.eq.s32.totalorder %v1484, %v1489
      %vm1525 = vcmp.eq.s32.totalorder %v1484, %v1493
      %v1526 = vsel %vm1494, 1.0, 0.0
      %v1527 = vsel %vm1495, 1.0, 0.0
      %v1528 = vsel %vm1496, 1.0, 0.0
      %v1529 = vsel %vm1497, 1.0, 0.0
      %v1530 = vsel %vm1498, 1.0, 0.0
      %v1531 = vsel %vm1499, 1.0, 0.0
      %v1532 = vsel %vm1500, 1.0, 0.0
      %v1533 = vsel %vm1501, 1.0, 0.0
      %v1534 = vsel %vm1502, 1.0, 0.0
      %v1535 = vsel %vm1503, 1.0, 0.0
      %v1536 = vsel %vm1504, 1.0, 0.0
      %v1537 = vsel %vm1505, 1.0, 0.0
      %v1538 = vsel %vm1506, 1.0, 0.0
      %v1539 = vsel %vm1507, 1.0, 0.0
      %v1540 = vsel %vm1508, 1.0, 0.0
      %v1541 = vsel %vm1509, 1.0, 0.0
      %v1542 = vsel %vm1510, 1.0, 0.0
      %v1543 = vsel %vm1511, 1.0, 0.0
      %v1544 = vsel %vm1512, 1.0, 0.0
      %v1545 = vsel %vm1513, 1.0, 0.0
      %v1546 = vsel %vm1514, 1.0, 0.0
      %v1547 = vsel %vm1515, 1.0, 0.0
      %v1548 = vsel %vm1516, 1.0, 0.0
      %v1549 = vsel %vm1517, 1.0, 0.0
      %v1550 = vsel %vm1518, 1.0, 0.0
      %v1551 = vsel %vm1519, 1.0, 0.0
      %v1552 = vsel %vm1520, 1.0, 0.0
      %v1553 = vsel %vm1521, 1.0, 0.0
      %v1554 = vsel %vm1522, 1.0, 0.0
      %v1555 = vsel %vm1523, 1.0, 0.0
      %v1556 = vsel %vm1524, 1.0, 0.0
      %v1557 = vsel %vm1525, 1.0, 0.0
      %v1558 = vpack.c.bf16 %v1528, %v1526
      %v1559 = vpack.c.bf16 %v1529, %v1527
      %v1560 = vpack.c.bf16 %v1532, %v1530
      %v1561 = vpack.c.bf16 %v1533, %v1531
      %v1562 = vpack.c.bf16 %v1536, %v1534
      %v1563 = vpack.c.bf16 %v1537, %v1535
      %v1564 = vpack.c.bf16 %v1540, %v1538
      %v1565 = vpack.c.bf16 %v1541, %v1539
      %v1566 = vpack.c.bf16 %v1544, %v1542
      %v1567 = vpack.c.bf16 %v1545, %v1543
      %v1568 = vpack.c.bf16 %v1548, %v1546
      %v1569 = vpack.c.bf16 %v1549, %v1547
      %v1570 = vpack.c.bf16 %v1552, %v1550
      %v1571 = vpack.c.bf16 %v1553, %v1551
      %v1572 = vpack.c.bf16 %v1556, %v1554
      %v1573 = vpack.c.bf16 %v1557, %v1555
      %v1574 = vld [vmem:[#allocation3] sm:$0xff]
      %v1575 = vld [vmem:[#allocation3 + $0x8] sm:$0xff]
      %v1576 = vld [vmem:[#allocation3 + $0x10] sm:$0xff]
      %v1577 = vld [vmem:[#allocation3 + $0x18] sm:$0xff]
      %v1578 = vld [vmem:[#allocation3 + $0x20] sm:$0xff]
      %v1579 = vld [vmem:[#allocation3 + $0x28] sm:$0xff]
      %v1580 = vld [vmem:[#allocation3 + $0x30] sm:$0xff]
      %v1581 = vld [vmem:[#allocation3 + $0x38] sm:$0xff]
      %v1582 = vld [vmem:[#allocation3 + $0x40] sm:$0xff]
      %v1583 = vld [vmem:[#allocation3 + $0x48] sm:$0xff]
      %v1584 = vld [vmem:[#allocation3 + $0x50] sm:$0xff]
      %v1585 = vld [vmem:[#allocation3 + $0x58] sm:$0xff]
      %v1586 = vld [vmem:[#allocation3 + $0x60] sm:$0xff]
      %v1587 = vld [vmem:[#allocation3 + $0x68] sm:$0xff]
      %v1588 = vld [vmem:[#allocation3 + $0x70] sm:$0xff]
      %v1589 = vld [vmem:[#allocation3 + $0x78] sm:$0xff]
      %v1590 = vpack.c.bf16 %v1437, %v1436
      %v1591 = vpack.c.bf16 %v1439, %v1438
      %v1592 = vpack.c.bf16 %v1441, %v1440
      %v1593 = vpack.c.bf16 %v1443, %v1442
      %v1594 = vpack.c.bf16 %v1445, %v1444
      %v1595 = vpack.c.bf16 %v1447, %v1446
      %v1596 = vpack.c.bf16 %v1449, %v1448
      %v1597 = vpack.c.bf16 %v1451, %v1450
      %v1598 = vpack.c.bf16 %v1453, %v1452
      %v1599 = vpack.c.bf16 %v1455, %v1454
      %v1600 = vpack.c.bf16 %v1457, %v1456
      %v1601 = vpack.c.bf16 %v1459, %v1458
      %v1602 = vpack.c.bf16 %v1461, %v1460
      %v1603 = vpack.c.bf16 %v1463, %v1462
      %v1604 = vpack.c.bf16 %v1465, %v1464
      %v1605 = vpack.c.bf16 %v1467, %v1466
      %1606 = vmatprep.subr.bf16.mxu0 0
      %1607 = vmatpush1.bf16.msra.mxu0 %v1590
      %1608 = vmatprep.subr.bf16.mxu0 0
      %1609 = vmatpush1.bf16.msra.mxu0 %v1591
      %1610 = vmatprep.subr.bf16.mxu0 0
      %1611 = vmatpush1.bf16.msra.mxu0 %v1592
      %1612 = vmatprep.subr.bf16.mxu0 0
      %1613 = vmatpush1.bf16.msra.mxu0 %v1593
      %1614 = vmatprep.subr.bf16.mxu0 0
      %1615 = vmatpush1.bf16.msra.mxu0 %v1594
      %1616 = vmatprep.subr.bf16.mxu0 0
      %1617 = vmatpush1.bf16.msra.mxu0 %v1595
      %1618 = vmatprep.subr.bf16.mxu0 0
      %1619 = vmatpush1.bf16.msra.mxu0 %v1596
      %1620 = vmatprep.subr.bf16.mxu0 0
      %1621 = vmatpush1.bf16.msra.mxu0 %v1597
      %1622 = vmatprep.subr.bf16.mxu0 0
      %1623 = vmatpush1.bf16.msra.mxu0 %v1598
      %1624 = vmatprep.subr.bf16.mxu0 0
      %1625 = vmatpush1.bf16.msra.mxu0 %v1599
      %1626 = vmatprep.subr.bf16.mxu0 0
      %1627 = vmatpush1.bf16.msra.mxu0 %v1600
      %1628 = vmatprep.subr.bf16.mxu0 0
      %1629 = vmatpush1.bf16.msra.mxu0 %v1601
      %1630 = vmatprep.subr.bf16.mxu0 0
      %1631 = vmatpush1.bf16.msra.mxu0 %v1602
      %1632 = vmatprep.subr.bf16.mxu0 0
      %1633 = vmatpush1.bf16.msra.mxu0 %v1603
      %1634 = vmatprep.subr.bf16.mxu0 0
      %1635 = vmatpush1.bf16.msra.mxu0 %v1604
      %1636 = vmatprep.subr.bf16.mxu0 0
      %1637 = vmatpush1.bf16.msra.mxu0 %v1605
      %1638 = vmatprep.mubr.bf16.mxu0 %v1559
      %1639 = vmatmul.mubr.bf16.gmra.mrb[0].mxu0 %v1558
      %v1640 = vpop.f32.mrb[0].mxu0
      %v1641 = vadd.f32 0.0, %v1640
      %v1642 = vpop.f32.mrb[0].mxu0
      %v1643 = vpop.f32.mrb[0].mxu0
      %v1644 = vadd.f32 0.0, %v1643
      %v1645 = vpop.f32.mrb[0].mxu0
      %1646 = vmatprep.mubr.bf16.mxu0 %v1561
      %1647 = vmatmul.mubr.bf16.gmra.mrb[0].mxu0 %v1560
      %v1648 = vpop.f32.mrb[0].mxu0
      %v1649 = vadd.f32 0.0, %v1648
      %v1650 = vpop.f32.mrb[0].mxu0
      %v1651 = vpop.f32.mrb[0].mxu0
      %v1652 = vadd.f32 0.0, %v1651
      %v1653 = vpop.f32.mrb[0].mxu0
      %1654 = vmatprep.mubr.bf16.mxu0 %v1563
      %1655 = vmatmul.mubr.bf16.gmra.mrb[0].mxu0 %v1562
      %v1656 = vpop.f32.mrb[0].mxu0
      %v1657 = vadd.f32 0.0, %v1656
      %v1658 = vpop.f32.mrb[0].mxu0
      %v1659 = vpop.f32.mrb[0].mxu0
      %v1660 = vadd.f32 0.0, %v1659
      %v1661 = vpop.f32.mrb[0].mxu0
      %1662 = vmatprep.mubr.bf16.mxu0 %v1565
      %1663 = vmatmul.mubr.bf16.gmra.mrb[0].mxu0 %v1564
      %v1664 = vpop.f32.mrb[0].mxu0
      %v1665 = vadd.f32 0.0, %v1664
      %v1666 = vpop.f32.mrb[0].mxu0
      %v1667 = vpop.f32.mrb[0].mxu0
      %v1668 = vadd.f32 0.0, %v1667
      %v1669 = vpop.f32.mrb[0].mxu0
      %1670 = vmatprep.mubr.bf16.mxu0 %v1567
      %1671 = vmatmul.mubr.bf16.gmra.mrb[0].mxu0 %v1566
      %v1672 = vpop.f32.mrb[0].mxu0
      %v1673 = vadd.f32 0.0, %v1672
      %v1674 = vpop.f32.mrb[0].mxu0
      %v1675 = vpop.f32.mrb[0].mxu0
      %v1676 = vadd.f32 0.0, %v1675
      %v1677 = vpop.f32.mrb[0].mxu0
      %1678 = vmatprep.mubr.bf16.mxu0 %v1569
      %1679 = vmatmul.mubr.bf16.gmra.mrb[0].mxu0 %v1568
      %v1680 = vpop.f32.mrb[0].mxu0
      %v1681 = vadd.f32 0.0, %v1680
      %v1682 = vpop.f32.mrb[0].mxu0
      %v1683 = vpop.f32.mrb[0].mxu0
      %v1684 = vadd.f32 0.0, %v1683
      %v1685 = vpop.f32.mrb[0].mxu0
      %1686 = vmatprep.mubr.bf16.mxu0 %v1571
      %1687 = vmatmul.mubr.bf16.gmra.mrb[0].mxu0 %v1570
      %v1688 = vpop.f32.mrb[0].mxu0
      %v1689 = vadd.f32 0.0, %v1688
      %v1690 = vpop.f32.mrb[0].mxu0
      %v1691 = vpop.f32.mrb[0].mxu0
      %v1692 = vadd.f32 0.0, %v1691
      %v1693 = vpop.f32.mrb[0].mxu0
      %1694 = vmatprep.mubr.bf16.mxu0 %v1573
      %1695 = vmatmul.mubr.bf16.gmra.mrb[0].mxu0 %v1572
      %v1696 = vpop.f32.mrb[0].mxu0
      %v1697 = vadd.f32 0.0, %v1696
      %v1698 = vpop.f32.mrb[0].mxu0
      %v1699 = vpop.f32.mrb[0].mxu0
      %v1700 = vadd.f32 0.0, %v1699
      %v1701 = vpop.f32.mrb[0].mxu0
      %1702 = vdwg.mxu0
      %v1703 = vadd.f32 %v1574, %v1641
      %v1704 = vadd.f32 %v1575, %v1644
      %v1705 = vadd.f32 %v1576, %v1649
      %v1706 = vadd.f32 %v1577, %v1652
      %v1707 = vadd.f32 %v1578, %v1657
      %v1708 = vadd.f32 %v1579, %v1660
      %v1709 = vadd.f32 %v1580, %v1665
      %v1710 = vadd.f32 %v1581, %v1668
      %v1711 = vadd.f32 %v1582, %v1673
      %v1712 = vadd.f32 %v1583, %v1676
      %v1713 = vadd.f32 %v1584, %v1681
      %v1714 = vadd.f32 %v1585, %v1684
      %v1715 = vadd.f32 %v1586, %v1689
      %v1716 = vadd.f32 %v1587, %v1692
      %v1717 = vadd.f32 %v1588, %v1697
      %v1718 = vadd.f32 %v1589, %v1700
      %1719 = vst [vmem:[#allocation3] sm:$0xff] %v1703
      %1720 = vst [vmem:[#allocation3 + $0x8] sm:$0xff] %v1704
      %1721 = vst [vmem:[#allocation3 + $0x10] sm:$0xff] %v1705
      %1722 = vst [vmem:[#allocation3 + $0x18] sm:$0xff] %v1706
      %1723 = vst [vmem:[#allocation3 + $0x20] sm:$0xff] %v1707
      %1724 = vst [vmem:[#allocation3 + $0x28] sm:$0xff] %v1708
      %1725 = vst [vmem:[#allocation3 + $0x30] sm:$0xff] %v1709
      %1726 = vst [vmem:[#allocation3 + $0x38] sm:$0xff] %v1710
      %1727 = vst [vmem:[#allocation3 + $0x40] sm:$0xff] %v1711
      %1728 = vst [vmem:[#allocation3 + $0x48] sm:$0xff] %v1712
      %1729 = vst [vmem:[#allocation3 + $0x50] sm:$0xff] %v1713
      %1730 = vst [vmem:[#allocation3 + $0x58] sm:$0xff] %v1714
      %1731 = vst [vmem:[#allocation3 + $0x60] sm:$0xff] %v1715
      %1732 = vst [vmem:[#allocation3 + $0x68] sm:$0xff] %v1716
      %1733 = vst [vmem:[#allocation3 + $0x70] sm:$0xff] %v1717
      %1734 = vst [vmem:[#allocation3 + $0x78] sm:$0xff] %v1718
      %p1735 = scmp.eq.s32.totalorder %s29, 1
      // Predicated region
      $region81: #{gine_forward.1} parent=71 // pred_check
        %p1736 = pneg %p1735
      $region82: #{gine_forward.1} parent=71 // pred_check_branch
        %1738 = sbr.rel (%p1736) target = $region84
      $region83: #{gine_forward.1} parent=71 // pred_region
        %v1739 = vld [vmem:[#allocation2] sm:$0xff]
        %v1740 = vld [vmem:[#allocation2 + $0x8] sm:$0xff]
        %v1741 = vld [vmem:[#allocation2 + $0x10] sm:$0xff]
        %v1742 = vld [vmem:[#allocation2 + $0x18] sm:$0xff]
        %v1743 = vld [vmem:[#allocation2 + $0x20] sm:$0xff]
        %v1744 = vld [vmem:[#allocation2 + $0x28] sm:$0xff]
        %v1745 = vld [vmem:[#allocation2 + $0x30] sm:$0xff]
        %v1746 = vld [vmem:[#allocation2 + $0x38] sm:$0xff]
        %v1747 = vld [vmem:[#allocation2 + $0x40] sm:$0xff]
        %v1748 = vld [vmem:[#allocation2 + $0x48] sm:$0xff]
        %v1749 = vld [vmem:[#allocation2 + $0x50] sm:$0xff]
        %v1750 = vld [vmem:[#allocation2 + $0x58] sm:$0xff]
        %v1751 = vld [vmem:[#allocation2 + $0x60] sm:$0xff]
        %v1752 = vld [vmem:[#allocation2 + $0x68] sm:$0xff]
        %v1753 = vld [vmem:[#allocation2 + $0x70] sm:$0xff]
        %v1754 = vld [vmem:[#allocation2 + $0x78] sm:$0xff]
        %v1755 = vld [vmem:[#allocation3] sm:$0xff]
        %v1756 = vld [vmem:[#allocation3 + $0x8] sm:$0xff]
        %v1757 = vld [vmem:[#allocation3 + $0x10] sm:$0xff]
        %v1758 = vld [vmem:[#allocation3 + $0x18] sm:$0xff]
        %v1759 = vld [vmem:[#allocation3 + $0x20] sm:$0xff]
        %v1760 = vld [vmem:[#allocation3 + $0x28] sm:$0xff]
        %v1761 = vld [vmem:[#allocation3 + $0x30] sm:$0xff]
        %v1762 = vld [vmem:[#allocation3 + $0x38] sm:$0xff]
        %v1763 = vld [vmem:[#allocation3 + $0x40] sm:$0xff]
        %v1764 = vld [vmem:[#allocation3 + $0x48] sm:$0xff]
        %v1765 = vld [vmem:[#allocation3 + $0x50] sm:$0xff]
        %v1766 = vld [vmem:[#allocation3 + $0x58] sm:$0xff]
        %v1767 = vld [vmem:[#allocation3 + $0x60] sm:$0xff]
        %v1768 = vld [vmem:[#allocation3 + $0x68] sm:$0xff]
        %v1769 = vld [vmem:[#allocation3 + $0x70] sm:$0xff]
        %v1770 = vld [vmem:[#allocation3 + $0x78] sm:$0xff]
        %v1771 = vadd.f32 %v1739, %v1755
        %v1772 = vadd.f32 %v1740, %v1756
        %v1773 = vadd.f32 %v1741, %v1757
        %v1774 = vadd.f32 %v1742, %v1758
        %v1775 = vadd.f32 %v1743, %v1759
        %v1776 = vadd.f32 %v1744, %v1760
        %v1777 = vadd.f32 %v1745, %v1761
        %v1778 = vadd.f32 %v1746, %v1762
        %v1779 = vadd.f32 %v1747, %v1763
        %v1780 = vadd.f32 %v1748, %v1764
        %v1781 = vadd.f32 %v1749, %v1765
        %v1782 = vadd.f32 %v1750, %v1766
        %v1783 = vadd.f32 %v1751, %v1767
        %v1784 = vadd.f32 %v1752, %v1768
        %v1785 = vadd.f32 %v1753, %v1769
        %v1786 = vadd.f32 %v1754, %v1770
        %v1787 = vpack.c.bf16 %v1772, %v1771
        %v1788 = vpack.c.bf16 %v1774, %v1773
        %v1789 = vpack.c.bf16 %v1776, %v1775
        %v1790 = vpack.c.bf16 %v1778, %v1777
        %v1791 = vpack.c.bf16 %v1780, %v1779
        %v1792 = vpack.c.bf16 %v1782, %v1781
        %v1793 = vpack.c.bf16 %v1784, %v1783
        %v1794 = vpack.c.bf16 %v1786, %v1785
        %v1795 = vld [vmem:[%s567] sm:$0xf]
        %v1796 = vld [vmem:[%s567 + $0x4] sm:$0xf]
        %v1797 = vld [vmem:[%s567 + $0x8] sm:$0xf]
        %v1798 = vld [vmem:[%s567 + $0xc] sm:$0xf]
        %v1799 = vld [vmem:[%s567 + $0x10] sm:$0xf]
        %v1800 = vld [vmem:[%s567 + $0x14] sm:$0xf]
        %v1801 = vld [vmem:[%s567 + $0x18] sm:$0xf]
        %v1802 = vld [vmem:[%s567 + $0x1c] sm:$0xf]
        %v1803 = vld [vmem:[%s567 + $0x20] sm:$0xf]
        %v1804 = vld [vmem:[%s567 + $0x24] sm:$0xf]
        %v1805 = vld [vmem:[%s567 + $0x28] sm:$0xf]
        %v1806 = vld [vmem:[%s567 + $0x2c] sm:$0xf]
        %v1807 = vld [vmem:[%s567 + $0x30] sm:$0xf]
        %v1808 = vld [vmem:[%s567 + $0x34] sm:$0xf]
        %v1809 = vld [vmem:[%s567 + $0x38] sm:$0xf]
        %v1810 = vld [vmem:[%s567 + $0x3c] sm:$0xf]
        %v1811 = vld [vmem:[%s570] sm:$0x1]
        %v1813 = vlaneseq
        %v1814 = vshrl.u32 %v1813, 7
        %v1815 = vsub.s32 0, %v1814
        %v1816 = vrot.slane %v1811, %v1815
        %v1834 = vunpack.c.l.b16 %v1795
        %v1835 = vunpack.c.l.b16 %v1796
        %v1836 = vunpack.c.l.b16 %v1797
        %v1837 = vunpack.c.l.b16 %v1798
        %v1838 = vunpack.c.l.b16 %v1799
        %v1839 = vunpack.c.l.b16 %v1800
        %v1840 = vunpack.c.l.b16 %v1801
        %v1841 = vunpack.c.l.b16 %v1802
        %v1842 = vunpack.c.l.b16 %v1803
        %v1843 = vunpack.c.l.b16 %v1804
        %v1844 = vunpack.c.l.b16 %v1805
        %v1845 = vunpack.c.l.b16 %v1806
        %v1846 = vunpack.c.l.b16 %v1807
        %v1847 = vunpack.c.l.b16 %v1808
        %v1848 = vunpack.c.l.b16 %v1809
        %v1849 = vunpack.c.l.b16 %v1810
        %v1850 = vpack.c.b16 %v1835, %v1834
        %v1851 = vpack.c.b16 %v1837, %v1836
        %v1852 = vpack.c.b16 %v1839, %v1838
        %v1853 = vpack.c.b16 %v1841, %v1840
        %v1854 = vpack.c.b16 %v1843, %v1842
        %v1855 = vpack.c.b16 %v1845, %v1844
        %v1856 = vpack.c.b16 %v1847, %v1846
        %v1857 = vpack.c.b16 %v1849, %v1848
        %1866 = vmatprep.subr.bf16.mxu0 0
        %1867 = vmatpush1.bf16.msra.mxu0 %v1850
        %1868 = vmatprep.subr.bf16.mxu0 0
        %1869 = vmatpush1.bf16.msra.mxu0 %v1851
        %1870 = vmatprep.subr.bf16.mxu0 0
        %1871 = vmatpush1.bf16.msra.mxu0 %v1852
        %1872 = vmatprep.subr.bf16.mxu0 0
        %1873 = vmatpush1.bf16.msra.mxu0 %v1853
        %1874 = vmatprep.subr.bf16.mxu0 0
        %1875 = vmatpush1.bf16.msra.mxu0 %v1854
        %1876 = vmatprep.subr.bf16.mxu0 0
        %1877 = vmatpush1.bf16.msra.mxu0 %v1855
        %1878 = vmatprep.subr.bf16.mxu0 0
        %1879 = vmatpush1.bf16.msra.mxu0 %v1856
        %1880 = vmatprep.subr.bf16.mxu0 0
        %1881 = vmatpush1.bf16.msra.mxu0 %v1857
        %1882 = vmatprep.subr.bf16.mxu0 0
        %1883 = vmatpush1.bf16.msra.mxu0 0
        %1884 = vmatprep.subr.bf16.mxu0 0
        %1885 = vmatpush1.bf16.msra.mxu0 0
        %1886 = vmatprep.subr.bf16.mxu0 0
        %1887 = vmatpush1.bf16.msra.mxu0 0
        %1888 = vmatprep.subr.bf16.mxu0 0
        %1889 = vmatpush1.bf16.msra.mxu0 0
        %1890 = vmatprep.subr.bf16.mxu0 0
        %1891 = vmatpush1.bf16.msra.mxu0 0
        %1892 = vmatprep.subr.bf16.mxu0 0
        %1893 = vmatpush1.bf16.msra.mxu0 0
        %1894 = vmatprep.subr.bf16.mxu0 0
        %1895 = vmatpush1.bf16.msra.mxu0 0
        %1896 = vmatprep.subr.bf16.mxu0 0
        %1897 = vmatpush1.bf16.msra.mxu0 0
        %1898 = vmatprep.mubr.bf16.mxu0 0
        %1899 = vmatmul.mubr.bf16.gmra.mrb[0].mxu0 %v1787
        %v1900 = vpop.f32.mrb[0].mxu0
        %v1901 = vadd.f32 %v1816, %v1900
        %v1902 = vpop.f32.mrb[0].mxu0
        %v1903 = vpop.f32.mrb[0].mxu0
        %v1904 = vadd.f32 %v1816, %v1903
        %v1905 = vpop.f32.mrb[0].mxu0
        %1906 = vmatprep.mubr.bf16.mxu0 0
        %1907 = vmatmul.mubr.bf16.gmra.mrb[0].mxu0 %v1788
        %v1908 = vpop.f32.mrb[0].mxu0
        %v1909 = vadd.f32 %v1816, %v1908
        %v1910 = vpop.f32.mrb[0].mxu0
        %v1911 = vpop.f32.mrb[0].mxu0
        %v1912 = vadd.f32 %v1816, %v1911
        %v1913 = vpop.f32.mrb[0].mxu0
        %1914 = vmatprep.mubr.bf16.mxu0 0
        %1915 = vmatmul.mubr.bf16.gmra.mrb[0].mxu0 %v1789
        %v1916 = vpop.f32.mrb[0].mxu0
        %v1917 = vadd.f32 %v1816, %v1916
        %v1918 = vpop.f32.mrb[0].mxu0
        %v1919 = vpop.f32.mrb[0].mxu0
        %v1920 = vadd.f32 %v1816, %v1919
        %v1921 = vpop.f32.mrb[0].mxu0
        %1922 = vmatprep.mubr.bf16.mxu0 0
        %1923 = vmatmul.mubr.bf16.gmra.mrb[0].mxu0 %v1790
        %v1924 = vpop.f32.mrb[0].mxu0
        %v1925 = vadd.f32 %v1816, %v1924
        %v1926 = vpop.f32.mrb[0].mxu0
        %v1927 = vpop.f32.mrb[0].mxu0
        %v1928 = vadd.f32 %v1816, %v1927
        %v1929 = vpop.f32.mrb[0].mxu0
        %1930 = vmatprep.mubr.bf16.mxu0 0
        %1931 = vmatmul.mubr.bf16.gmra.mrb[0].mxu0 %v1791
        %v1932 = vpop.f32.mrb[0].mxu0
        %v1933 = vadd.f32 %v1816, %v1932
        %v1934 = vpop.f32.mrb[0].mxu0
        %v1935 = vpop.f32.mrb[0].mxu0
        %v1936 = vadd.f32 %v1816, %v1935
        %v1937 = vpop.f32.mrb[0].mxu0
        %1938 = vmatprep.mubr.bf16.mxu0 0
        %1939 = vmatmul.mubr.bf16.gmra.mrb[0].mxu0 %v1792
        %v1940 = vpop.f32.mrb[0].mxu0
        %v1941 = vadd.f32 %v1816, %v1940
        %v1942 = vpop.f32.mrb[0].mxu0
        %v1943 = vpop.f32.mrb[0].mxu0
        %v1944 = vadd.f32 %v1816, %v1943
        %v1945 = vpop.f32.mrb[0].mxu0
        %1946 = vmatprep.mubr.bf16.mxu0 0
        %1947 = vmatmul.mubr.bf16.gmra.mrb[0].mxu0 %v1793
        %v1948 = vpop.f32.mrb[0].mxu0
        %v1949 = vadd.f32 %v1816, %v1948
        %v1950 = vpop.f32.mrb[0].mxu0
        %v1951 = vpop.f32.mrb[0].mxu0
        %v1952 = vadd.f32 %v1816, %v1951
        %v1953 = vpop.f32.mrb[0].mxu0
        %1954 = vmatprep.mubr.bf16.mxu0 0
        %1955 = vmatmul.mubr.bf16.gmra.mrb[0].mxu0 %v1794
        %v1956 = vpop.f32.mrb[0].mxu0
        %v1957 = vadd.f32 %v1816, %v1956
        %v1958 = vpop.f32.mrb[0].mxu0
        %v1959 = vpop.f32.mrb[0].mxu0
        %v1960 = vadd.f32 %v1816, %v1959
        %v1961 = vpop.f32.mrb[0].mxu0
        %1962 = vdwg.mxu0
        %v1963 = vtanh.pop %v1901
        %v1964 = vtanh.pop %v1904
        %v1965 = vtanh.pop %v1909
        %v1966 = vtanh.pop %v1912
        %v1967 = vtanh.pop %v1917
        %v1968 = vtanh.pop %v1920
        %v1969 = vtanh.pop %v1925
        %v1970 = vtanh.pop %v1928
        %v1971 = vtanh.pop %v1933
        %v1972 = vtanh.pop %v1936
        %v1973 = vtanh.pop %v1941
        %v1974 = vtanh.pop %v1944
        %v1975 = vtanh.pop %v1949
        %v1976 = vtanh.pop %v1952
        %v1977 = vtanh.pop %v1957
        %v1978 = vtanh.pop %v1960
        %v1979 = vld [vmem:[%s573] sm:$0x1]
        %v1981 = vlaneseq
        %v1982 = vshrl.u32 %v1981, 7
        %v1983 = vsub.s32 0, %v1982
        %v1984 = vrot.slane %v1979, %v1983
        %v1986 = vmul.f32 %v1963, %v1984
        %v1987 = vmul.f32 %v1964, %v1984
        %v1988 = vmul.f32 %v1965, %v1984
        %v1989 = vmul.f32 %v1966, %v1984
        %v1990 = vmul.f32 %v1967, %v1984
        %v1991 = vmul.f32 %v1968, %v1984
        %v1992 = vmul.f32 %v1969, %v1984
        %v1993 = vmul.f32 %v1970, %v1984
        %v1994 = vmul.f32 %v1971, %v1984
        %v1995 = vmul.f32 %v1972, %v1984
        %v1996 = vmul.f32 %v1973, %v1984
        %v1997 = vmul.f32 %v1974, %v1984
        %v1998 = vmul.f32 %v1975, %v1984
        %v1999 = vmul.f32 %v1976, %v1984
        %v2000 = vmul.f32 %v1977, %v1984
        %v2001 = vmul.f32 %v1978, %v1984
        %v2002 = vld [vmem:[%s576] sm:$0x1]
        %v2004 = vlaneseq
        %v2005 = vshrl.u32 %v2004, 7
        %v2006 = vsub.s32 0, %v2005
        %v2007 = vrot.slane %v2002, %v2006
        %v2009 = vadd.f32 %v1986, %v2007
        %v2010 = vadd.f32 %v1987, %v2007
        %v2011 = vadd.f32 %v1988, %v2007
        %v2012 = vadd.f32 %v1989, %v2007
        %v2013 = vadd.f32 %v1990, %v2007
        %v2014 = vadd.f32 %v1991, %v2007
        %v2015 = vadd.f32 %v1992, %v2007
        %v2016 = vadd.f32 %v1993, %v2007
        %v2017 = vadd.f32 %v1994, %v2007
        %v2018 = vadd.f32 %v1995, %v2007
        %v2019 = vadd.f32 %v1996, %v2007
        %v2020 = vadd.f32 %v1997, %v2007
        %v2021 = vadd.f32 %v1998, %v2007
        %v2022 = vadd.f32 %v1999, %v2007
        %v2023 = vadd.f32 %v2000, %v2007
        %v2024 = vadd.f32 %v2001, %v2007
        %2025 = vst [vmem:[#allocation2] sm:$0xff] %v2009
        %2026 = vst [vmem:[#allocation2 + $0x8] sm:$0xff] %v2010
        %2027 = vst [vmem:[#allocation2 + $0x10] sm:$0xff] %v2011
        %2028 = vst [vmem:[#allocation2 + $0x18] sm:$0xff] %v2012
        %2029 = vst [vmem:[#allocation2 + $0x20] sm:$0xff] %v2013
        %2030 = vst [vmem:[#allocation2 + $0x28] sm:$0xff] %v2014
        %2031 = vst [vmem:[#allocation2 + $0x30] sm:$0xff] %v2015
        %2032 = vst [vmem:[#allocation2 + $0x38] sm:$0xff] %v2016
        %2033 = vst [vmem:[#allocation2 + $0x40] sm:$0xff] %v2017
        %2034 = vst [vmem:[#allocation2 + $0x48] sm:$0xff] %v2018
        %2035 = vst [vmem:[#allocation2 + $0x50] sm:$0xff] %v2019
        %2036 = vst [vmem:[#allocation2 + $0x58] sm:$0xff] %v2020
        %2037 = vst [vmem:[#allocation2 + $0x60] sm:$0xff] %v2021
        %2038 = vst [vmem:[#allocation2 + $0x68] sm:$0xff] %v2022
        %2039 = vst [vmem:[#allocation2 + $0x70] sm:$0xff] %v2023
        %2040 = vst [vmem:[#allocation2 + $0x78] sm:$0xff] %v2024
      $region84: #{gine_forward.1} parent=71 // pred_fallthru
        _
      %p2041 = scmp.eq.s32.totalorder %s28, 1
      %p2042 = pnand %p2041, %p1735
      %p2043 = pneg %p2042
      // Predicated region
      $region85: #{gine_forward.1} parent=71 // pred_check
        _
      $region86: #{gine_forward.1} parent=71 // pred_check_branch
        %2045 = sbr.rel (%p2042) target = $region88
      $region87: #{gine_forward.1} parent=71 // pred_region
        %v2046 = vld [vmem:[#allocation2] sm:$0xff]
        %v2047 = vld [vmem:[#allocation2 + $0x8] sm:$0xff]
        %v2048 = vld [vmem:[#allocation2 + $0x10] sm:$0xff]
        %v2049 = vld [vmem:[#allocation2 + $0x18] sm:$0xff]
        %v2050 = vld [vmem:[#allocation2 + $0x20] sm:$0xff]
        %v2051 = vld [vmem:[#allocation2 + $0x28] sm:$0xff]
        %v2052 = vld [vmem:[#allocation2 + $0x30] sm:$0xff]
        %v2053 = vld [vmem:[#allocation2 + $0x38] sm:$0xff]
        %v2054 = vld [vmem:[#allocation2 + $0x40] sm:$0xff]
        %v2055 = vld [vmem:[#allocation2 + $0x48] sm:$0xff]
        %v2056 = vld [vmem:[#allocation2 + $0x50] sm:$0xff]
        %v2057 = vld [vmem:[#allocation2 + $0x58] sm:$0xff]
        %v2058 = vld [vmem:[#allocation2 + $0x60] sm:$0xff]
        %v2059 = vld [vmem:[#allocation2 + $0x68] sm:$0xff]
        %v2060 = vld [vmem:[#allocation2 + $0x70] sm:$0xff]
        %v2061 = vld [vmem:[#allocation2 + $0x78] sm:$0xff]
        %v2062 = vpack.c.bf16 %v2047, %v2046
        %v2063 = vpack.c.bf16 %v2049, %v2048
        %v2064 = vpack.c.bf16 %v2051, %v2050
        %v2065 = vpack.c.bf16 %v2053, %v2052
        %v2066 = vpack.c.bf16 %v2055, %v2054
        %v2067 = vpack.c.bf16 %v2057, %v2056
        %v2068 = vpack.c.bf16 %v2059, %v2058
        %v2069 = vpack.c.bf16 %v2061, %v2060
        %v2070 = vld [vmem:[%s12] sm:$0xf]
        %v2071 = vld [vmem:[%s12 + $0x4] sm:$0xf]
        %v2072 = vld [vmem:[%s12 + $0x8] sm:$0xf]
        %v2073 = vld [vmem:[%s12 + $0xc] sm:$0xf]
        %v2074 = vld [vmem:[%s12 + $0x10] sm:$0xf]
        %v2075 = vld [vmem:[%s12 + $0x14] sm:$0xf]
        %v2076 = vld [vmem:[%s12 + $0x18] sm:$0xf]
        %v2077 = vld [vmem:[%s12 + $0x1c] sm:$0xf]
        %v2078 = vld [vmem:[%s12 + $0x20] sm:$0xf]
        %v2079 = vld [vmem:[%s12 + $0x24] sm:$0xf]
        %v2080 = vld [vmem:[%s12 + $0x28] sm:$0xf]
        %v2081 = vld [vmem:[%s12 + $0x2c] sm:$0xf]
        %v2082 = vld [vmem:[%s12 + $0x30] sm:$0xf]
        %v2083 = vld [vmem:[%s12 + $0x34] sm:$0xf]
        %v2084 = vld [vmem:[%s12 + $0x38] sm:$0xf]
        %v2085 = vld [vmem:[%s12 + $0x3c] sm:$0xf]
        %v2102 = vunpack.c.l.b16 %v2070
        %v2103 = vunpack.c.l.b16 %v2071
        %v2104 = vunpack.c.l.b16 %v2072
        %v2105 = vunpack.c.l.b16 %v2073
        %v2106 = vunpack.c.l.b16 %v2074
        %v2107 = vunpack.c.l.b16 %v2075
        %v2108 = vunpack.c.l.b16 %v2076
        %v2109 = vunpack.c.l.b16 %v2077
        %v2110 = vunpack.c.l.b16 %v2078
        %v2111 = vunpack.c.l.b16 %v2079
        %v2112 = vunpack.c.l.b16 %v2080
        %v2113 = vunpack.c.l.b16 %v2081
        %v2114 = vunpack.c.l.b16 %v2082
        %v2115 = vunpack.c.l.b16 %v2083
        %v2116 = vunpack.c.l.b16 %v2084
        %v2117 = vunpack.c.l.b16 %v2085
        %v2118 = vpack.c.b16 %v2103, %v2102
        %v2119 = vpack.c.b16 %v2105, %v2104
        %v2120 = vpack.c.b16 %v2107, %v2106
        %v2121 = vpack.c.b16 %v2109, %v2108
        %v2122 = vpack.c.b16 %v2111, %v2110
        %v2123 = vpack.c.b16 %v2113, %v2112
        %v2124 = vpack.c.b16 %v2115, %v2114
        %v2125 = vpack.c.b16 %v2117, %v2116
        %2134 = vmatprep.subr.bf16.mxu0 0
        %2135 = vmatpush1.bf16.msra.mxu0 %v2118
        %2136 = vmatprep.subr.bf16.mxu0 0
        %2137 = vmatpush1.bf16.msra.mxu0 %v2119
        %2138 = vmatprep.subr.bf16.mxu0 0
        %2139 = vmatpush1.bf16.msra.mxu0 %v2120
        %2140 = vmatprep.subr.bf16.mxu0 0
        %2141 = vmatpush1.bf16.msra.mxu0 %v2121
        %2142 = vmatprep.subr.bf16.mxu0 0
        %2143 = vmatpush1.bf16.msra.mxu0 %v2122
        %2144 = vmatprep.subr.bf16.mxu0 0
        %2145 = vmatpush1.bf16.msra.mxu0 %v2123
        %2146 = vmatprep.subr.bf16.mxu0 0
        %2147 = vmatpush1.bf16.msra.mxu0 %v2124
        %2148 = vmatprep.subr.bf16.mxu0 0
        %2149 = vmatpush1.bf16.msra.mxu0 %v2125
        %2150 = vmatprep.subr.bf16.mxu0 0
        %2151 = vmatpush1.bf16.msra.mxu0 0
        %2152 = vmatprep.subr.bf16.mxu0 0
        %2153 = vmatpush1.bf16.msra.mxu0 0
        %2154 = vmatprep.subr.bf16.mxu0 0
        %2155 = vmatpush1.bf16.msra.mxu0 0
        %2156 = vmatprep.subr.bf16.mxu0 0
        %2157 = vmatpush1.bf16.msra.mxu0 0
        %2158 = vmatprep.subr.bf16.mxu0 0
        %2159 = vmatpush1.bf16.msra.mxu0 0
        %2160 = vmatprep.subr.bf16.mxu0 0
        %2161 = vmatpush1.bf16.msra.mxu0 0
        %2162 = vmatprep.subr.bf16.mxu0 0
        %2163 = vmatpush1.bf16.msra.mxu0 0
        %2164 = vmatprep.subr.bf16.mxu0 0
        %2165 = vmatpush1.bf16.msra.mxu0 0
        %2166 = vmatprep.mubr.bf16.mxu0 0
        %2167 = vmatmul.mubr.bf16.gmra.mrb[0].mxu0 %v2062
        %v2168 = vpop.f32.mrb[0].mxu0
        %v2169 = vadd.f32 0.0, %v2168
        %v2170 = vpop.f32.mrb[0].mxu0
        %v2171 = vpop.f32.mrb[0].mxu0
        %v2172 = vadd.f32 0.0, %v2171
        %v2173 = vpop.f32.mrb[0].mxu0
        %2174 = vmatprep.mubr.bf16.mxu0 0
        %2175 = vmatmul.mubr.bf16.gmra.mrb[0].mxu0 %v2063
        %v2176 = vpop.f32.mrb[0].mxu0
        %v2177 = vadd.f32 0.0, %v2176
        %v2178 = vpop.f32.mrb[0].mxu0
        %v2179 = vpop.f32.mrb[0].mxu0
        %v2180 = vadd.f32 0.0, %v2179
        %v2181 = vpop.f32.mrb[0].mxu0
        %2182 = vmatprep.mubr.bf16.mxu0 0
        %2183 = vmatmul.mubr.bf16.gmra.mrb[0].mxu0 %v2064
        %v2184 = vpop.f32.mrb[0].mxu0
        %v2185 = vadd.f32 0.0, %v2184
        %v2186 = vpop.f32.mrb[0].mxu0
        %v2187 = vpop.f32.mrb[0].mxu0
        %v2188 = vadd.f32 0.0, %v2187
        %v2189 = vpop.f32.mrb[0].mxu0
        %2190 = vmatprep.mubr.bf16.mxu0 0
        %2191 = vmatmul.mubr.bf16.gmra.mrb[0].mxu0 %v2065
        %v2192 = vpop.f32.mrb[0].mxu0
        %v2193 = vadd.f32 0.0, %v2192
        %v2194 = vpop.f32.mrb[0].mxu0
        %v2195 = vpop.f32.mrb[0].mxu0
        %v2196 = vadd.f32 0.0, %v2195
        %v2197 = vpop.f32.mrb[0].mxu0
        %2198 = vmatprep.mubr.bf16.mxu0 0
        %2199 = vmatmul.mubr.bf16.gmra.mrb[0].mxu0 %v2066
        %v2200 = vpop.f32.mrb[0].mxu0
        %v2201 = vadd.f32 0.0, %v2200
        %v2202 = vpop.f32.mrb[0].mxu0
        %v2203 = vpop.f32.mrb[0].mxu0
        %v2204 = vadd.f32 0.0, %v2203
        %v2205 = vpop.f32.mrb[0].mxu0
        %2206 = vmatprep.mubr.bf16.mxu0 0
        %2207 = vmatmul.mubr.bf16.gmra.mrb[0].mxu0 %v2067
        %v2208 = vpop.f32.mrb[0].mxu0
        %v2209 = vadd.f32 0.0, %v2208
        %v2210 = vpop.f32.mrb[0].mxu0
        %v2211 = vpop.f32.mrb[0].mxu0
        %v2212 = vadd.f32 0.0, %v2211
        %v2213 = vpop.f32.mrb[0].mxu0
        %2214 = vmatprep.mubr.bf16.mxu0 0
        %2215 = vmatmul.mubr.bf16.gmra.mrb[0].mxu0 %v2068
        %v2216 = vpop.f32.mrb[0].mxu0
        %v2217 = vadd.f32 0.0, %v2216
        %v2218 = vpop.f32.mrb[0].mxu0
        %v2219 = vpop.f32.mrb[0].mxu0
        %v2220 = vadd.f32 0.0, %v2219
        %v2221 = vpop.f32.mrb[0].mxu0
        %2222 = vmatprep.mubr.bf16.mxu0 0
        %2223 = vmatmul.mubr.bf16.gmra.mrb[0].mxu0 %v2069
        %v2224 = vpop.f32.mrb[0].mxu0
        %v2225 = vadd.f32 0.0, %v2224
        %v2226 = vpop.f32.mrb[0].mxu0
        %v2227 = vpop.f32.mrb[0].mxu0
        %v2228 = vadd.f32 0.0, %v2227
        %v2229 = vpop.f32.mrb[0].mxu0
        %2230 = vdwg.mxu0
        %v2231 = vtanh.pop %v2169
        %v2232 = vtanh.pop %v2172
        %v2233 = vtanh.pop %v2177
        %v2234 = vtanh.pop %v2180
        %v2235 = vtanh.pop %v2185
        %v2236 = vtanh.pop %v2188
        %v2237 = vtanh.pop %v2193
        %v2238 = vtanh.pop %v2196
        %v2239 = vtanh.pop %v2201
        %v2240 = vtanh.pop %v2204
        %v2241 = vtanh.pop %v2209
        %v2242 = vtanh.pop %v2212
        %v2243 = vtanh.pop %v2217
        %v2244 = vtanh.pop %v2220
        %v2245 = vtanh.pop %v2225
        %v2246 = vtanh.pop %v2228
        %2247 = vst [vmem:[%s13] sm:$0xff] %v2231
        %2248 = vst [vmem:[%s13 + $0x8] sm:$0xff] %v2232
        %2249 = vst [vmem:[%s13 + $0x10] sm:$0xff] %v2233
        %2250 = vst [vmem:[%s13 + $0x18] sm:$0xff] %v2234
        %2251 = vst [vmem:[%s13 + $0x20] sm:$0xff] %v2235
        %2252 = vst [vmem:[%s13 + $0x28] sm:$0xff] %v2236
        %2253 = vst [vmem:[%s13 + $0x30] sm:$0xff] %v2237
        %2254 = vst [vmem:[%s13 + $0x38] sm:$0xff] %v2238
        %2255 = vst [vmem:[%s13 + $0x40] sm:$0xff] %v2239
        %2256 = vst [vmem:[%s13 + $0x48] sm:$0xff] %v2240
        %2257 = vst [vmem:[%s13 + $0x50] sm:$0xff] %v2241
        %2258 = vst [vmem:[%s13 + $0x58] sm:$0xff] %v2242
        %2259 = vst [vmem:[%s13 + $0x60] sm:$0xff] %v2243
        %2260 = vst [vmem:[%s13 + $0x68] sm:$0xff] %v2244
        %2261 = vst [vmem:[%s13 + $0x70] sm:$0xff] %v2245
        %2262 = vst [vmem:[%s13 + $0x78] sm:$0xff] %v2246
      $region88: #{gine_forward.1} parent=71 // pred_fallthru
        _
      // Predicated region
      $region89: #{gine_forward.1} parent=71 // pred_check
        %p2263 = pneg %p367
      $region90: #{gine_forward.1} parent=71 // pred_check_branch
        %2265 = sbr.rel (%p2263) target = $region92
      $region91: #{gine_forward.1} parent=71 // pred_region
        _
      $region92: #{gine_forward.1} parent=71 // pred_fallthru
        _
      // Predicated region
      $region93: #{gine_forward.1} parent=71 // pred_check
        %p2266 = pneg %p367
      $region94: #{gine_forward.1} parent=71 // pred_check_branch
        %2268 = sbr.rel (%p2266) target = $region96
      $region95: #{gine_forward.1} parent=71 // pred_region
        _
      $region96: #{gine_forward.1} parent=71 // pred_fallthru
        _
    $region72: #{gine_forward.1} parent=5 // pred_fallthru
      _
    %p2269 = scmp.le.s32.totalorder 2, %s19
    // Predicated region
    $region97: #{gine_forward.1} parent=5 // pred_check
      %p2270 = pneg %p2269
    $region98: #{gine_forward.1} parent=5 // pred_check_branch
      %2272 = sbr.rel (%p2270) target = $region100
    $region99: #{gine_forward.1} parent=5 // pred_region
      %s2273 = ssub.s32 %s19, 2
    $region100: #{gine_forward.1} parent=5 // pred_fallthru
      _
  $region6: #{gine_forward.1} parent=0 // loop_footer
    %s23 = sadd.s32 1, %s19
  $region7: #{gine_forward.1} parent=0 // loop_footer_branch
    %18 = sbr.rel target = $region3
  $region8: #{gine_forward.1} parent=0 // loop_exit
    _

</llo_original>
